<compile_context>
chip_gen: v7x
topology: tpu7x:2x2x1
jax: 0.10.0
libtpu: 0.0.40
codegen_flags: <defaults>
</compile_context>

<pallas_src>
import math
import numpy as np
import jax
import jax.numpy as jnp
from jax.experimental import pallas as pl
from jax.experimental.pallas import tpu as pltpu  # noqa: F401  (TPU backend assumed)

# ---------------- configuration (small, forward-consistent shapes) ----------------
B, S, H = 2, 8, 32          # batch, seq len, hidden_dim
NH, HD = 4, 8               # num heads, head dim (NH*HD == H)
F = 64                      # FFN intermediate size
VOCAB = 50                  # vocab size
C = 3                       # num_classes
PAD = 0                     # pad_num
N_LAYERS = 2                # encoder layers
MASK_VAL = -1e9


def _layernorm(x, g, b, eps=1e-12):
    mu = jnp.mean(x, axis=-1, keepdims=True)
    var = jnp.mean((x - mu) ** 2, axis=-1, keepdims=True)
    return (x - mu) * jax.lax.rsqrt(var + eps) * g + b


def _mm(a, b):
    # bf16 MXU operands, f32 accumulation (elementwise math stays f32 outside).
    return jnp.dot(a.astype(jnp.bfloat16), b.astype(jnp.bfloat16),
                   preferred_element_type=jnp.float32)


def _bmm(eq, a, b):
    return jnp.einsum(eq, a.astype(jnp.bfloat16), b.astype(jnp.bfloat16),
                      preferred_element_type=jnp.float32)


# ---------------- Pallas kernel: full fused forward ----------------
def fused_model_kernel(ids_ref, wemb_ref, pos_ref, elng_ref, elnb_ref,
                       wq_ref, bq_ref, wk_ref, bk_ref, wv_ref, bv_ref,
                       wo_ref, bo_ref, ln1g_ref, ln1b_ref,
                       w1_ref, b1_ref, w2_ref, b2_ref, ln2g_ref, ln2b_ref,
                       clsw_ref, clsb_ref,
                       hmask_ref, bones_ref, clssel_ref,
                       out_ref):
    ids = ids_ref[...]                                              # (B, S) int32

    # get_attn_mask: additive -1e9 bias on padded keys, computed ONCE and tiled
    # across the NH head blocks of the fused lane dimension.
    bias = jnp.where(ids == PAD, MASK_VAL, 0.0).astype(jnp.float32)  # (B, S)
    bias_m = jnp.tile(bias, (1, NH))[:, None, :]                     # (B, 1, NH*S)

    # In-kernel embedding gather: one-hot selection matmul (kept f32 -> exact selection).
    vocab_iota = jax.lax.broadcasted_iota(jnp.int32, (B, S, VOCAB), 2)
    onehot = (ids[:, :, None] == vocab_iota).astype(jnp.float32)     # (B, S, VOCAB)
    x = jnp.dot(onehot.reshape(B * S, VOCAB), wemb_ref[...],
                preferred_element_type=jnp.float32)                  # (B*S, H)

    # position embedding + embedding LayerNorm
    x = x + jnp.tile(pos_ref[...], (B, 1))                           # (B*S, H)
    x = _layernorm(x, elng_ref[...], elnb_ref[...])

    hmask = hmask_ref[...]          # (NH*S, H)    head block-diagonal mask (constant)
    bones = bones_ref[...]          # (NH*S, NH*S) block-ones for per-head softmax sums

    scale = 1.0 / math.sqrt(HD)
    for li in range(N_LAYERS):                                       # static unroll
        q = _mm(x, wq_ref[li]) + bq_ref[li]                          # (B*S, H)
        k = _mm(x, wk_ref[li]) + bk_ref[li]
        v = _mm(x, wv_ref[li]) + bv_ref[li]
        q3 = q.reshape(B, S, H)

        # Head-fused attention via block-diagonal K/V:
        #   kbd[b, h*S + t, :] = k[b, t, :] masked to head h's HD columns,
        # so one batched contraction gives every head's scores, and one batched
        # contraction gives the already-concatenated per-head contexts.
        kbd = jnp.tile(k.reshape(B, S, H), (1, NH, 1)) * hmask[None]  # (B, NH*S, H)
        vbd = jnp.tile(v.reshape(B, S, H), (1, NH, 1)) * hmask[None]  # (B, NH*S, H)

        s = _bmm('bqd,bmd->bqm', q3, kbd) * scale + bias_m            # (B, S, NH*S)
        # no max-subtraction: scores are O(1); masked keys (-1e9) exp-underflow to 0,
        # and the CLS key (position 0) is never padded so denominators stay > 0.
        p = jnp.exp(s)                                                # f32
        denom = jnp.dot(p.reshape(B * S, NH * S), bones,
                        preferred_element_type=jnp.float32)           # (B*S, NH*S)
        p = p * pl.reciprocal(denom.reshape(B, S, NH * S), approx=True)

        ctx = _bmm('bqm,bmd->bqd', p, vbd)                            # (B, S, H)
        attn = _mm(ctx.reshape(B * S, H), wo_ref[li]) + bo_ref[li]
        x = _layernorm(x + attn, ln1g_ref[li], ln1b_ref[li])

        ff = _mm(x, w1_ref[li]) + b1_ref[li]
        # TODO(synk): if the injected PyTorch BERT uses exact (erf) GELU, switch to
        # approximate=False; tanh-approx GELU is used here for robust TPU lowering.
        ff = jax.nn.gelu(ff)
        ff = _mm(ff, w2_ref[li]) + b2_ref[li]
        x = _layernorm(x + ff, ln2g_ref[li], ln2b_ref[li])

    # CLS pooling: constant selection matmul picking row b*S of the flat activations.
    cls = jnp.dot(clssel_ref[...], x, preferred_element_type=jnp.float32)  # (B, H)

    # dropout: identity at inference; classifier + sigmoid (f32)
    logits = _mm(cls, clsw_ref[...]) + clsb_ref[...]
    out_ref[...] = jax.nn.sigmoid(logits)


# ---------------- trace-time constant matrices ----------------
def _make_constants():
    hmask = np.zeros((NH * S, H), np.float32)
    for h in range(NH):
        hmask[h * S:(h + 1) * S, h * HD:(h + 1) * HD] = 1.0
    bones = np.kron(np.eye(NH, dtype=np.float32),
                    np.ones((S, S), np.float32))                   # (NH*S, NH*S)
    clssel = np.zeros((B, B * S), np.float32)
    for b in range(B):
        clssel[b, b * S] = 1.0
    return hmask, bones, clssel


_HEAD_MASK, _BLOCK_ONES, _CLS_SEL = _make_constants()

_COST = pl.CostEstimate(flops=800_000, transcendentals=8_192, bytes_accessed=90_000)


# ---------------- wrapper: one pallas_call, no grid ----------------
@jax.jit
def custom_model2_forward(input_ids, params):
    return pl.pallas_call(
        fused_model_kernel,
        out_shape=jax.ShapeDtypeStruct((B, C), jnp.float32),
        cost_estimate=_COST,
        # no grid: single invocation; every operand is a full-array VMEM block
        # (total working set ~100 KB << VMEM on v5e/v6e/v7x).
    )(input_ids.astype(jnp.int32),
      params["word_emb"], params["pos_emb"], params["emb_ln_g"], params["emb_ln_b"],
      params["wq"], params["bq"], params["wk"], params["bk"],
      params["wv"], params["bv"], params["wo"], params["bo"],
      params["ln1g"], params["ln1b"],
      params["w1"], params["b1"], params["w2"], params["b2"],
      params["ln2g"], params["ln2b"],
      params["cls_w"], params["cls_b"],
      jnp.asarray(_HEAD_MASK), jnp.asarray(_BLOCK_ONES), jnp.asarray(_CLS_SEL))


# ---------------- deterministic parameter init (layer params stacked on axis 0) ----------------
def init_params(key):
    def nrm(k, shape, scale=0.02):
        return (scale * jax.random.normal(k, shape)).astype(jnp.float32)

    keys = jax.random.split(key, 9)
    L = N_LAYERS
    return {
        "word_emb": nrm(keys[0], (VOCAB, H)),
        "pos_emb": nrm(keys[1], (S, H)),
        "emb_ln_g": jnp.ones((1, H), jnp.float32),
        "emb_ln_b": jnp.zeros((1, H), jnp.float32),
        "wq": nrm(keys[2], (L, H, H)), "bq": jnp.zeros((L, 1, H), jnp.float32),
        "wk": nrm(keys[3], (L, H, H)), "bk": jnp.zeros((L, 1, H), jnp.float32),
        "wv": nrm(keys[4], (L, H, H)), "bv": jnp.zeros((L, 1, H), jnp.float32),
        "wo": nrm(keys[5], (L, H, H)), "bo": jnp.zeros((L, 1, H), jnp.float32),
        "ln1g": jnp.ones((L, 1, H), jnp.float32), "ln1b": jnp.zeros((L, 1, H), jnp.float32),
        "w1": nrm(keys[6], (L, H, F)), "b1": jnp.zeros((L, 1, F), jnp.float32),
        "w2": nrm(keys[7], (L, F, H)), "b2": jnp.zeros((L, 1, H), jnp.float32),
        "ln2g": jnp.ones((L, 1, H), jnp.float32), "ln2b": jnp.zeros((L, 1, H), jnp.float32),
        "cls_w": nrm(keys[8], (H, C)),
        "cls_b": jnp.zeros((1, C), jnp.float32),
    }


if __name__ == "__main__":
    key = jax.random.PRNGKey(0)
    pkey, dkey = jax.random.split(key)
    params = init_params(pkey)

    # deterministic input_ids with trailing padding (== PAD) to exercise the mask
    input_ids = jax.random.randint(dkey, (B, S), minval=1, maxval=VOCAB, dtype=jnp.int32)
    input_ids = input_ids.at[:, 0].set(2)        # CLS-like token (never PAD)
    input_ids = input_ids.at[0, 6:].set(PAD)     # pad tail of sequence 0
    input_ids = input_ids.at[1, 5:].set(PAD)     # pad tail of sequence 1

    out = custom_model2_forward(input_ids, params)
    out = jax.block_until_ready(out)

    assert out.shape == (B, C) and out.dtype == jnp.float32
    assert bool(jnp.all(jnp.isfinite(out)))
    assert bool(jnp.all((out > 0.0) & (out < 1.0)))   # sigmoid range sanity check
    print("KERNEL_OK")
</pallas_src>

<mosaic_0001>
module attributes {stable_mosaic.version = 11 : i64} {
  func.func @fused_model_kernel(%arg0: memref<2x8xi32, #tpu.memory_space<vmem>>, %arg1: memref<50x32xf32, #tpu.memory_space<vmem>>, %arg2: memref<8x32xf32, #tpu.memory_space<vmem>>, %arg3: memref<1x32xf32, #tpu.memory_space<vmem>>, %arg4: memref<1x32xf32, #tpu.memory_space<vmem>>, %arg5: memref<2x32x32xf32, #tpu.memory_space<vmem>>, %arg6: memref<2x1x32xf32, #tpu.memory_space<vmem>>, %arg7: memref<2x32x32xf32, #tpu.memory_space<vmem>>, %arg8: memref<2x1x32xf32, #tpu.memory_space<vmem>>, %arg9: memref<2x32x32xf32, #tpu.memory_space<vmem>>, %arg10: memref<2x1x32xf32, #tpu.memory_space<vmem>>, %arg11: memref<2x32x32xf32, #tpu.memory_space<vmem>>, %arg12: memref<2x1x32xf32, #tpu.memory_space<vmem>>, %arg13: memref<2x1x32xf32, #tpu.memory_space<vmem>>, %arg14: memref<2x1x32xf32, #tpu.memory_space<vmem>>, %arg15: memref<2x32x64xf32, #tpu.memory_space<vmem>>, %arg16: memref<2x1x64xf32, #tpu.memory_space<vmem>>, %arg17: memref<2x64x32xf32, #tpu.memory_space<vmem>>, %arg18: memref<2x1x32xf32, #tpu.memory_space<vmem>>, %arg19: memref<2x1x32xf32, #tpu.memory_space<vmem>>, %arg20: memref<2x1x32xf32, #tpu.memory_space<vmem>>, %arg21: memref<32x3xf32, #tpu.memory_space<vmem>>, %arg22: memref<1x3xf32, #tpu.memory_space<vmem>>, %arg23: memref<32x32xf32, #tpu.memory_space<vmem>>, %arg24: memref<32x32xf32, #tpu.memory_space<vmem>>, %arg25: memref<2x16xf32, #tpu.memory_space<vmem>>, %arg26: memref<2x3xf32, #tpu.memory_space<vmem>>) attributes {dimension_semantics = [], scalar_prefetch = 0 : i64, scratch_operands = 0 : i64, tpu.core_type = #tpu.core_type<tc>} {
    %c0 = arith.constant 0 : index
    %c0_0 = arith.constant 0 : index
    %0 = vector.load %arg0[%c0, %c0_0] : memref<2x8xi32, #tpu.memory_space<vmem>>, vector<2x8xi32>
    %c0_i32 = arith.constant 0 : i32
    %1 = vector.broadcast %c0_i32 : i32 to vector<2x8xi32>
    %2 = arith.cmpi eq, %0, %1 : vector<2x8xi32>
    %cst = arith.constant -1.000000e+09 : f32
    %cst_1 = arith.constant 0.000000e+00 : f32
    %3 = vector.broadcast %cst : f32 to vector<2x8xf32>
    %4 = vector.broadcast %cst_1 : f32 to vector<2x8xf32>
    %5 = arith.select %2, %3, %4 : vector<2x8xi1>, vector<2x8xf32>
    %6 = tpu.concatenate %5, %5, %5, %5 in 1 : vector<2x8xf32>, vector<2x8xf32>, vector<2x8xf32>, vector<2x8xf32> -> vector<2x32xf32>
    %7 = vector.shape_cast %6 : vector<2x32xf32> to vector<2x1x32xf32>
    %8 = tpu.iota {dimensions = array<i32: 2>} : vector<2x8x50xi32>
    %9 = vector.shape_cast %0 : vector<2x8xi32> to vector<2x8x1xi32>
    %10 = vector.broadcast %9 : vector<2x8x1xi32> to vector<2x8x50xi32>
    %11 = arith.cmpi eq, %10, %8 : vector<2x8x50xi32>
    %12 = arith.extui %11 : vector<2x8x50xi1> to vector<2x8x50xi32>
    %13 = arith.sitofp %12 : vector<2x8x50xi32> to vector<2x8x50xf32>
    %14 = vector.shape_cast %13 : vector<2x8x50xf32> to vector<16x50xf32>
    %c0_2 = arith.constant 0 : index
    %c0_3 = arith.constant 0 : index
    %15 = vector.load %arg1[%c0_2, %c0_3] : memref<50x32xf32, #tpu.memory_space<vmem>>, vector<50x32xf32>
    %cst_4 = arith.constant dense<0.000000e+00> : vector<16x32xf32>
    %16 = tpu.matmul %14, %15, %cst_4 {dimension_numbers = #tpu.dot_dimension_numbers<[1], [0], [0], [1], [0, 0, 1, 1], [], []>} : vector<16x50xf32>, vector<50x32xf32>, vector<16x32xf32> -> vector<16x32xf32>
    %c0_5 = arith.constant 0 : index
    %c0_6 = arith.constant 0 : index
    %17 = vector.load %arg2[%c0_5, %c0_6] : memref<8x32xf32, #tpu.memory_space<vmem>>, vector<8x32xf32>
    %18 = tpu.concatenate %17, %17 in 0 : vector<8x32xf32>, vector<8x32xf32> -> vector<16x32xf32>
    %19 = arith.addf %16, %18 : vector<16x32xf32>
    %c0_7 = arith.constant 0 : index
    %c0_8 = arith.constant 0 : index
    %20 = vector.load %arg3[%c0_7, %c0_8] : memref<1x32xf32, #tpu.memory_space<vmem>>, vector<1x32xf32>
    %c0_9 = arith.constant 0 : index
    %c0_10 = arith.constant 0 : index
    %21 = vector.load %arg4[%c0_9, %c0_10] : memref<1x32xf32, #tpu.memory_space<vmem>>, vector<1x32xf32>
    %cst_11 = arith.constant dense<0.000000e+00> : vector<16xf32>
    %22 = vector.multi_reduction <add>, %19, %cst_11 [1] : vector<16x32xf32> to vector<16xf32>
    %23 = vector.shape_cast %22 : vector<16xf32> to vector<16x1xf32>
    %cst_12 = arith.constant 3.200000e+01 : f32
    %24 = vector.broadcast %cst_12 : f32 to vector<16x1xf32>
    %25 = arith.divf %23, %24 : vector<16x1xf32>
    %26 = vector.broadcast %25 : vector<16x1xf32> to vector<16x32xf32>
    %27 = arith.subf %19, %26 : vector<16x32xf32>
    %28 = arith.mulf %27, %27 : vector<16x32xf32>
    %cst_13 = arith.constant dense<0.000000e+00> : vector<16xf32>
    %29 = vector.multi_reduction <add>, %28, %cst_13 [1] : vector<16x32xf32> to vector<16xf32>
    %30 = vector.shape_cast %29 : vector<16xf32> to vector<16x1xf32>
    %cst_14 = arith.constant 3.200000e+01 : f32
    %31 = vector.broadcast %cst_14 : f32 to vector<16x1xf32>
    %32 = arith.divf %30, %31 : vector<16x1xf32>
    %33 = vector.broadcast %25 : vector<16x1xf32> to vector<16x32xf32>
    %34 = arith.subf %19, %33 : vector<16x32xf32>
    %cst_15 = arith.constant 9.99999996E-13 : f32
    %35 = vector.broadcast %cst_15 : f32 to vector<16x1xf32>
    %36 = arith.addf %32, %35 : vector<16x1xf32>
    %37 = math.rsqrt %36 : vector<16x1xf32>
    %38 = vector.broadcast %37 : vector<16x1xf32> to vector<16x32xf32>
    %39 = arith.mulf %34, %38 : vector<16x32xf32>
    %40 = vector.broadcast %20 : vector<1x32xf32> to vector<16x32xf32>
    %41 = arith.mulf %39, %40 : vector<16x32xf32>
    %42 = vector.broadcast %21 : vector<1x32xf32> to vector<16x32xf32>
    %43 = arith.addf %41, %42 : vector<16x32xf32>
    %c0_16 = arith.constant 0 : index
    %c0_17 = arith.constant 0 : index
    %44 = vector.load %arg23[%c0_16, %c0_17] : memref<32x32xf32, #tpu.memory_space<vmem>>, vector<32x32xf32>
    %c0_18 = arith.constant 0 : index
    %c0_19 = arith.constant 0 : index
    %45 = vector.load %arg24[%c0_18, %c0_19] : memref<32x32xf32, #tpu.memory_space<vmem>>, vector<32x32xf32>
    %c0_20 = arith.constant 0 : index
    %c0_21 = arith.constant 0 : index
    %c0_22 = arith.constant 0 : index
    %46 = vector.load %arg5[%c0_20, %c0_21, %c0_22] : memref<2x32x32xf32, #tpu.memory_space<vmem>>, vector<1x32x32xf32>
    %47 = vector.shape_cast %46 : vector<1x32x32xf32> to vector<32x32xf32>
    %48 = arith.truncf %43 : vector<16x32xf32> to vector<16x32xbf16>
    %49 = arith.truncf %47 : vector<32x32xf32> to vector<32x32xbf16>
    %cst_23 = arith.constant dense<0.000000e+00> : vector<16x32xf32>
    %50 = tpu.matmul %48, %49, %cst_23 {dimension_numbers = #tpu.dot_dimension_numbers<[1], [0], [0], [1], [0, 0, 1, 1], [], []>} : vector<16x32xbf16>, vector<32x32xbf16>, vector<16x32xf32> -> vector<16x32xf32>
    %c0_24 = arith.constant 0 : index
    %c0_25 = arith.constant 0 : index
    %c0_26 = arith.constant 0 : index
    %51 = vector.load %arg6[%c0_24, %c0_25, %c0_26] : memref<2x1x32xf32, #tpu.memory_space<vmem>>, vector<1x1x32xf32>
    %52 = vector.shape_cast %51 : vector<1x1x32xf32> to vector<1x32xf32>
    %53 = vector.broadcast %52 : vector<1x32xf32> to vector<16x32xf32>
    %54 = arith.addf %50, %53 : vector<16x32xf32>
    %c0_27 = arith.constant 0 : index
    %c0_28 = arith.constant 0 : index
    %c0_29 = arith.constant 0 : index
    %55 = vector.load %arg7[%c0_27, %c0_28, %c0_29] : memref<2x32x32xf32, #tpu.memory_space<vmem>>, vector<1x32x32xf32>
    %56 = vector.shape_cast %55 : vector<1x32x32xf32> to vector<32x32xf32>
    %57 = arith.truncf %43 : vector<16x32xf32> to vector<16x32xbf16>
    %58 = arith.truncf %56 : vector<32x32xf32> to vector<32x32xbf16>
    %cst_30 = arith.constant dense<0.000000e+00> : vector<16x32xf32>
    %59 = tpu.matmul %57, %58, %cst_30 {dimension_numbers = #tpu.dot_dimension_numbers<[1], [0], [0], [1], [0, 0, 1, 1], [], []>} : vector<16x32xbf16>, vector<32x32xbf16>, vector<16x32xf32> -> vector<16x32xf32>
    %c0_31 = arith.constant 0 : index
    %c0_32 = arith.constant 0 : index
    %c0_33 = arith.constant 0 : index
    %60 = vector.load %arg8[%c0_31, %c0_32, %c0_33] : memref<2x1x32xf32, #tpu.memory_space<vmem>>, vector<1x1x32xf32>
    %61 = vector.shape_cast %60 : vector<1x1x32xf32> to vector<1x32xf32>
    %62 = vector.broadcast %61 : vector<1x32xf32> to vector<16x32xf32>
    %63 = arith.addf %59, %62 : vector<16x32xf32>
    %c0_34 = arith.constant 0 : index
    %c0_35 = arith.constant 0 : index
    %c0_36 = arith.constant 0 : index
    %64 = vector.load %arg9[%c0_34, %c0_35, %c0_36] : memref<2x32x32xf32, #tpu.memory_space<vmem>>, vector<1x32x32xf32>
    %65 = vector.shape_cast %64 : vector<1x32x32xf32> to vector<32x32xf32>
    %66 = arith.truncf %43 : vector<16x32xf32> to vector<16x32xbf16>
    %67 = arith.truncf %65 : vector<32x32xf32> to vector<32x32xbf16>
    %cst_37 = arith.constant dense<0.000000e+00> : vector<16x32xf32>
    %68 = tpu.matmul %66, %67, %cst_37 {dimension_numbers = #tpu.dot_dimension_numbers<[1], [0], [0], [1], [0, 0, 1, 1], [], []>} : vector<16x32xbf16>, vector<32x32xbf16>, vector<16x32xf32> -> vector<16x32xf32>
    %c0_38 = arith.constant 0 : index
    %c0_39 = arith.constant 0 : index
    %c0_40 = arith.constant 0 : index
    %69 = vector.load %arg10[%c0_38, %c0_39, %c0_40] : memref<2x1x32xf32, #tpu.memory_space<vmem>>, vector<1x1x32xf32>
    %70 = vector.shape_cast %69 : vector<1x1x32xf32> to vector<1x32xf32>
    %71 = vector.broadcast %70 : vector<1x32xf32> to vector<16x32xf32>
    %72 = arith.addf %68, %71 : vector<16x32xf32>
    %73 = vector.shape_cast %54 : vector<16x32xf32> to vector<2x8x32xf32>
    %74 = vector.shape_cast %63 : vector<16x32xf32> to vector<2x8x32xf32>
    %75 = tpu.concatenate %74, %74, %74, %74 in 1 : vector<2x8x32xf32>, vector<2x8x32xf32>, vector<2x8x32xf32>, vector<2x8x32xf32> -> vector<2x32x32xf32>
    %76 = vector.shape_cast %44 : vector<32x32xf32> to vector<1x32x32xf32>
    %77 = vector.broadcast %76 : vector<1x32x32xf32> to vector<2x32x32xf32>
    %78 = arith.mulf %75, %77 : vector<2x32x32xf32>
    %79 = vector.shape_cast %72 : vector<16x32xf32> to vector<2x8x32xf32>
    %80 = tpu.concatenate %79, %79, %79, %79 in 1 : vector<2x8x32xf32>, vector<2x8x32xf32>, vector<2x8x32xf32>, vector<2x8x32xf32> -> vector<2x32x32xf32>
    %81 = vector.shape_cast %44 : vector<32x32xf32> to vector<1x32x32xf32>
    %82 = vector.broadcast %81 : vector<1x32x32xf32> to vector<2x32x32xf32>
    %83 = arith.mulf %80, %82 : vector<2x32x32xf32>
    %84 = arith.truncf %73 : vector<2x8x32xf32> to vector<2x8x32xbf16>
    %85 = arith.truncf %78 : vector<2x32x32xf32> to vector<2x32x32xbf16>
    "tpu.trace_start"() <{level = 10 : i32, message = "bqd,bmd->bqm"}> : () -> ()
    %cst_41 = arith.constant dense<0.000000e+00> : vector<2x8x32xf32>
    %86 = tpu.matmul %84, %85, %cst_41 {dimension_numbers = #tpu.dot_dimension_numbers<[2], [2], [1], [1], [0, 0, 0, 1, 1, 1], [0], [0]>} : vector<2x8x32xbf16>, vector<2x32x32xbf16>, vector<2x8x32xf32> -> vector<2x8x32xf32>
    "tpu.trace_stop"() : () -> ()
    %cst_42 = arith.constant 0.353553385 : f32
    %87 = vector.broadcast %cst_42 : f32 to vector<2x8x32xf32>
    %88 = arith.mulf %86, %87 : vector<2x8x32xf32>
    %89 = vector.broadcast %7 : vector<2x1x32xf32> to vector<2x8x32xf32>
    %90 = arith.addf %88, %89 : vector<2x8x32xf32>
    %91 = math.exp %90 : vector<2x8x32xf32>
    %92 = vector.shape_cast %91 : vector<2x8x32xf32> to vector<16x32xf32>
    %cst_43 = arith.constant dense<0.000000e+00> : vector<16x32xf32>
    %93 = tpu.matmul %92, %45, %cst_43 {dimension_numbers = #tpu.dot_dimension_numbers<[1], [0], [0], [1], [0, 0, 1, 1], [], []>} : vector<16x32xf32>, vector<32x32xf32>, vector<16x32xf32> -> vector<16x32xf32>
    %94 = vector.shape_cast %93 : vector<16x32xf32> to vector<2x8x32xf32>
    %95 = tpu.reciprocal %94 {approx = true} : vector<2x8x32xf32> -> vector<2x8x32xf32>
    %96 = arith.mulf %91, %95 : vector<2x8x32xf32>
    %97 = arith.truncf %96 : vector<2x8x32xf32> to vector<2x8x32xbf16>
    %98 = arith.truncf %83 : vector<2x32x32xf32> to vector<2x32x32xbf16>
    "tpu.trace_start"() <{level = 10 : i32, message = "bqm,bmd->bqd"}> : () -> ()
    %cst_44 = arith.constant dense<0.000000e+00> : vector<2x8x32xf32>
    %99 = tpu.matmul %97, %98, %cst_44 {dimension_numbers = #tpu.dot_dimension_numbers<[2], [1], [1], [2], [0, 0, 0, 1, 1, 2], [0], [0]>} : vector<2x8x32xbf16>, vector<2x32x32xbf16>, vector<2x8x32xf32> -> vector<2x8x32xf32>
    "tpu.trace_stop"() : () -> ()
    %100 = vector.shape_cast %99 : vector<2x8x32xf32> to vector<16x32xf32>
    %c0_45 = arith.constant 0 : index
    %c0_46 = arith.constant 0 : index
    %c0_47 = arith.constant 0 : index
    %101 = vector.load %arg11[%c0_45, %c0_46, %c0_47] : memref<2x32x32xf32, #tpu.memory_space<vmem>>, vector<1x32x32xf32>
    %102 = vector.shape_cast %101 : vector<1x32x32xf32> to vector<32x32xf32>
    %103 = arith.truncf %100 : vector<16x32xf32> to vector<16x32xbf16>
    %104 = arith.truncf %102 : vector<32x32xf32> to vector<32x32xbf16>
    %cst_48 = arith.constant dense<0.000000e+00> : vector<16x32xf32>
    %105 = tpu.matmul %103, %104, %cst_48 {dimension_numbers = #tpu.dot_dimension_numbers<[1], [0], [0], [1], [0, 0, 1, 1], [], []>} : vector<16x32xbf16>, vector<32x32xbf16>, vector<16x32xf32> -> vector<16x32xf32>
    %c0_49 = arith.constant 0 : index
    %c0_50 = arith.constant 0 : index
    %c0_51 = arith.constant 0 : index
    %106 = vector.load %arg12[%c0_49, %c0_50, %c0_51] : memref<2x1x32xf32, #tpu.memory_space<vmem>>, vector<1x1x32xf32>
    %107 = vector.shape_cast %106 : vector<1x1x32xf32> to vector<1x32xf32>
    %108 = vector.broadcast %107 : vector<1x32xf32> to vector<16x32xf32>
    %109 = arith.addf %105, %108 : vector<16x32xf32>
    %110 = arith.addf %43, %109 : vector<16x32xf32>
    %c0_52 = arith.constant 0 : index
    %c0_53 = arith.constant 0 : index
    %c0_54 = arith.constant 0 : index
    %111 = vector.load %arg13[%c0_52, %c0_53, %c0_54] : memref<2x1x32xf32, #tpu.memory_space<vmem>>, vector<1x1x32xf32>
    %112 = vector.shape_cast %111 : vector<1x1x32xf32> to vector<1x32xf32>
    %c0_55 = arith.constant 0 : index
    %c0_56 = arith.constant 0 : index
    %c0_57 = arith.constant 0 : index
    %113 = vector.load %arg14[%c0_55, %c0_56, %c0_57] : memref<2x1x32xf32, #tpu.memory_space<vmem>>, vector<1x1x32xf32>
    %114 = vector.shape_cast %113 : vector<1x1x32xf32> to vector<1x32xf32>
    %cst_58 = arith.constant dense<0.000000e+00> : vector<16xf32>
    %115 = vector.multi_reduction <add>, %110, %cst_58 [1] : vector<16x32xf32> to vector<16xf32>
    %116 = vector.shape_cast %115 : vector<16xf32> to vector<16x1xf32>
    %cst_59 = arith.constant 3.200000e+01 : f32
    %117 = vector.broadcast %cst_59 : f32 to vector<16x1xf32>
    %118 = arith.divf %116, %117 : vector<16x1xf32>
    %119 = vector.broadcast %118 : vector<16x1xf32> to vector<16x32xf32>
    %120 = arith.subf %110, %119 : vector<16x32xf32>
    %121 = arith.mulf %120, %120 : vector<16x32xf32>
    %cst_60 = arith.constant dense<0.000000e+00> : vector<16xf32>
    %122 = vector.multi_reduction <add>, %121, %cst_60 [1] : vector<16x32xf32> to vector<16xf32>
    %123 = vector.shape_cast %122 : vector<16xf32> to vector<16x1xf32>
    %cst_61 = arith.constant 3.200000e+01 : f32
    %124 = vector.broadcast %cst_61 : f32 to vector<16x1xf32>
    %125 = arith.divf %123, %124 : vector<16x1xf32>
    %126 = vector.broadcast %118 : vector<16x1xf32> to vector<16x32xf32>
    %127 = arith.subf %110, %126 : vector<16x32xf32>
    %cst_62 = arith.constant 9.99999996E-13 : f32
    %128 = vector.broadcast %cst_62 : f32 to vector<16x1xf32>
    %129 = arith.addf %125, %128 : vector<16x1xf32>
    %130 = math.rsqrt %129 : vector<16x1xf32>
    %131 = vector.broadcast %130 : vector<16x1xf32> to vector<16x32xf32>
    %132 = arith.mulf %127, %131 : vector<16x32xf32>
    %133 = vector.broadcast %112 : vector<1x32xf32> to vector<16x32xf32>
    %134 = arith.mulf %132, %133 : vector<16x32xf32>
    %135 = vector.broadcast %114 : vector<1x32xf32> to vector<16x32xf32>
    %136 = arith.addf %134, %135 : vector<16x32xf32>
    %c0_63 = arith.constant 0 : index
    %c0_64 = arith.constant 0 : index
    %c0_65 = arith.constant 0 : index
    %137 = vector.load %arg15[%c0_63, %c0_64, %c0_65] : memref<2x32x64xf32, #tpu.memory_space<vmem>>, vector<1x32x64xf32>
    %138 = vector.shape_cast %137 : vector<1x32x64xf32> to vector<32x64xf32>
    %139 = arith.truncf %136 : vector<16x32xf32> to vector<16x32xbf16>
    %140 = arith.truncf %138 : vector<32x64xf32> to vector<32x64xbf16>
    %cst_66 = arith.constant dense<0.000000e+00> : vector<16x64xf32>
    %141 = tpu.matmul %139, %140, %cst_66 {dimension_numbers = #tpu.dot_dimension_numbers<[1], [0], [0], [1], [0, 0, 1, 1], [], []>} : vector<16x32xbf16>, vector<32x64xbf16>, vector<16x64xf32> -> vector<16x64xf32>
    %c0_67 = arith.constant 0 : index
    %c0_68 = arith.constant 0 : index
    %c0_69 = arith.constant 0 : index
    %142 = vector.load %arg16[%c0_67, %c0_68, %c0_69] : memref<2x1x64xf32, #tpu.memory_space<vmem>>, vector<1x1x64xf32>
    %143 = vector.shape_cast %142 : vector<1x1x64xf32> to vector<1x64xf32>
    %144 = vector.broadcast %143 : vector<1x64xf32> to vector<16x64xf32>
    %145 = arith.addf %141, %144 : vector<16x64xf32>
    %146 = arith.mulf %145, %145 : vector<16x64xf32>
    %147 = arith.mulf %145, %146 : vector<16x64xf32>
    %cst_70 = arith.constant 4.471500e-02 : f32
    %148 = vector.broadcast %cst_70 : f32 to vector<16x64xf32>
    %149 = arith.mulf %148, %147 : vector<16x64xf32>
    %150 = arith.addf %145, %149 : vector<16x64xf32>
    %cst_71 = arith.constant 0.797884583 : f32
    %151 = vector.broadcast %cst_71 : f32 to vector<16x64xf32>
    %152 = arith.mulf %151, %150 : vector<16x64xf32>
    %153 = math.tanh %152 : vector<16x64xf32>
    %cst_72 = arith.constant 1.000000e+00 : f32
    %154 = vector.broadcast %cst_72 : f32 to vector<16x64xf32>
    %155 = arith.addf %154, %153 : vector<16x64xf32>
    %cst_73 = arith.constant 5.000000e-01 : f32
    %156 = vector.broadcast %cst_73 : f32 to vector<16x64xf32>
    %157 = arith.mulf %156, %155 : vector<16x64xf32>
    %158 = arith.mulf %145, %157 : vector<16x64xf32>
    %c0_74 = arith.constant 0 : index
    %c0_75 = arith.constant 0 : index
    %c0_76 = arith.constant 0 : index
    %159 = vector.load %arg17[%c0_74, %c0_75, %c0_76] : memref<2x64x32xf32, #tpu.memory_space<vmem>>, vector<1x64x32xf32>
    %160 = vector.shape_cast %159 : vector<1x64x32xf32> to vector<64x32xf32>
    %161 = arith.truncf %158 : vector<16x64xf32> to vector<16x64xbf16>
    %162 = arith.truncf %160 : vector<64x32xf32> to vector<64x32xbf16>
    %cst_77 = arith.constant dense<0.000000e+00> : vector<16x32xf32>
    %163 = tpu.matmul %161, %162, %cst_77 {dimension_numbers = #tpu.dot_dimension_numbers<[1], [0], [0], [1], [0, 0, 1, 1], [], []>} : vector<16x64xbf16>, vector<64x32xbf16>, vector<16x32xf32> -> vector<16x32xf32>
    %c0_78 = arith.constant 0 : index
    %c0_79 = arith.constant 0 : index
    %c0_80 = arith.constant 0 : index
    %164 = vector.load %arg18[%c0_78, %c0_79, %c0_80] : memref<2x1x32xf32, #tpu.memory_space<vmem>>, vector<1x1x32xf32>
    %165 = vector.shape_cast %164 : vector<1x1x32xf32> to vector<1x32xf32>
    %166 = vector.broadcast %165 : vector<1x32xf32> to vector<16x32xf32>
    %167 = arith.addf %163, %166 : vector<16x32xf32>
    %168 = arith.addf %136, %167 : vector<16x32xf32>
    %c0_81 = arith.constant 0 : index
    %c0_82 = arith.constant 0 : index
    %c0_83 = arith.constant 0 : index
    %169 = vector.load %arg19[%c0_81, %c0_82, %c0_83] : memref<2x1x32xf32, #tpu.memory_space<vmem>>, vector<1x1x32xf32>
    %170 = vector.shape_cast %169 : vector<1x1x32xf32> to vector<1x32xf32>
    %c0_84 = arith.constant 0 : index
    %c0_85 = arith.constant 0 : index
    %c0_86 = arith.constant 0 : index
    %171 = vector.load %arg20[%c0_84, %c0_85, %c0_86] : memref<2x1x32xf32, #tpu.memory_space<vmem>>, vector<1x1x32xf32>
    %172 = vector.shape_cast %171 : vector<1x1x32xf32> to vector<1x32xf32>
    %cst_87 = arith.constant dense<0.000000e+00> : vector<16xf32>
    %173 = vector.multi_reduction <add>, %168, %cst_87 [1] : vector<16x32xf32> to vector<16xf32>
    %174 = vector.shape_cast %173 : vector<16xf32> to vector<16x1xf32>
    %cst_88 = arith.constant 3.200000e+01 : f32
    %175 = vector.broadcast %cst_88 : f32 to vector<16x1xf32>
    %176 = arith.divf %174, %175 : vector<16x1xf32>
    %177 = vector.broadcast %176 : vector<16x1xf32> to vector<16x32xf32>
    %178 = arith.subf %168, %177 : vector<16x32xf32>
    %179 = arith.mulf %178, %178 : vector<16x32xf32>
    %cst_89 = arith.constant dense<0.000000e+00> : vector<16xf32>
    %180 = vector.multi_reduction <add>, %179, %cst_89 [1] : vector<16x32xf32> to vector<16xf32>
    %181 = vector.shape_cast %180 : vector<16xf32> to vector<16x1xf32>
    %cst_90 = arith.constant 3.200000e+01 : f32
    %182 = vector.broadcast %cst_90 : f32 to vector<16x1xf32>
    %183 = arith.divf %181, %182 : vector<16x1xf32>
    %184 = vector.broadcast %176 : vector<16x1xf32> to vector<16x32xf32>
    %185 = arith.subf %168, %184 : vector<16x32xf32>
    %cst_91 = arith.constant 9.99999996E-13 : f32
    %186 = vector.broadcast %cst_91 : f32 to vector<16x1xf32>
    %187 = arith.addf %183, %186 : vector<16x1xf32>
    %188 = math.rsqrt %187 : vector<16x1xf32>
    %189 = vector.broadcast %188 : vector<16x1xf32> to vector<16x32xf32>
    %190 = arith.mulf %185, %189 : vector<16x32xf32>
    %191 = vector.broadcast %170 : vector<1x32xf32> to vector<16x32xf32>
    %192 = arith.mulf %190, %191 : vector<16x32xf32>
    %193 = vector.broadcast %172 : vector<1x32xf32> to vector<16x32xf32>
    %194 = arith.addf %192, %193 : vector<16x32xf32>
    %c1 = arith.constant 1 : index
    %c0_92 = arith.constant 0 : index
    %c0_93 = arith.constant 0 : index
    %195 = vector.load %arg5[%c1, %c0_92, %c0_93] : memref<2x32x32xf32, #tpu.memory_space<vmem>>, vector<1x32x32xf32>
    %196 = vector.shape_cast %195 : vector<1x32x32xf32> to vector<32x32xf32>
    %197 = arith.truncf %194 : vector<16x32xf32> to vector<16x32xbf16>
    %198 = arith.truncf %196 : vector<32x32xf32> to vector<32x32xbf16>
    %cst_94 = arith.constant dense<0.000000e+00> : vector<16x32xf32>
    %199 = tpu.matmul %197, %198, %cst_94 {dimension_numbers = #tpu.dot_dimension_numbers<[1], [0], [0], [1], [0, 0, 1, 1], [], []>} : vector<16x32xbf16>, vector<32x32xbf16>, vector<16x32xf32> -> vector<16x32xf32>
    %c1_95 = arith.constant 1 : index
    %c0_96 = arith.constant 0 : index
    %c0_97 = arith.constant 0 : index
    %200 = vector.load %arg6[%c1_95, %c0_96, %c0_97] : memref<2x1x32xf32, #tpu.memory_space<vmem>>, vector<1x1x32xf32>
    %201 = vector.shape_cast %200 : vector<1x1x32xf32> to vector<1x32xf32>
    %202 = vector.broadcast %201 : vector<1x32xf32> to vector<16x32xf32>
    %203 = arith.addf %199, %202 : vector<16x32xf32>
    %c1_98 = arith.constant 1 : index
    %c0_99 = arith.constant 0 : index
    %c0_100 = arith.constant 0 : index
    %204 = vector.load %arg7[%c1_98, %c0_99, %c0_100] : memref<2x32x32xf32, #tpu.memory_space<vmem>>, vector<1x32x32xf32>
    %205 = vector.shape_cast %204 : vector<1x32x32xf32> to vector<32x32xf32>
    %206 = arith.truncf %194 : vector<16x32xf32> to vector<16x32xbf16>
    %207 = arith.truncf %205 : vector<32x32xf32> to vector<32x32xbf16>
    %cst_101 = arith.constant dense<0.000000e+00> : vector<16x32xf32>
    %208 = tpu.matmul %206, %207, %cst_101 {dimension_numbers = #tpu.dot_dimension_numbers<[1], [0], [0], [1], [0, 0, 1, 1], [], []>} : vector<16x32xbf16>, vector<32x32xbf16>, vector<16x32xf32> -> vector<16x32xf32>
    %c1_102 = arith.constant 1 : index
    %c0_103 = arith.constant 0 : index
    %c0_104 = arith.constant 0 : index
    %209 = vector.load %arg8[%c1_102, %c0_103, %c0_104] : memref<2x1x32xf32, #tpu.memory_space<vmem>>, vector<1x1x32xf32>
    %210 = vector.shape_cast %209 : vector<1x1x32xf32> to vector<1x32xf32>
    %211 = vector.broadcast %210 : vector<1x32xf32> to vector<16x32xf32>
    %212 = arith.addf %208, %211 : vector<16x32xf32>
    %c1_105 = arith.constant 1 : index
    %c0_106 = arith.constant 0 : index
    %c0_107 = arith.constant 0 : index
    %213 = vector.load %arg9[%c1_105, %c0_106, %c0_107] : memref<2x32x32xf32, #tpu.memory_space<vmem>>, vector<1x32x32xf32>
    %214 = vector.shape_cast %213 : vector<1x32x32xf32> to vector<32x32xf32>
    %215 = arith.truncf %194 : vector<16x32xf32> to vector<16x32xbf16>
    %216 = arith.truncf %214 : vector<32x32xf32> to vector<32x32xbf16>
    %cst_108 = arith.constant dense<0.000000e+00> : vector<16x32xf32>
    %217 = tpu.matmul %215, %216, %cst_108 {dimension_numbers = #tpu.dot_dimension_numbers<[1], [0], [0], [1], [0, 0, 1, 1], [], []>} : vector<16x32xbf16>, vector<32x32xbf16>, vector<16x32xf32> -> vector<16x32xf32>
    %c1_109 = arith.constant 1 : index
    %c0_110 = arith.constant 0 : index
    %c0_111 = arith.constant 0 : index
    %218 = vector.load %arg10[%c1_109, %c0_110, %c0_111] : memref<2x1x32xf32, #tpu.memory_space<vmem>>, vector<1x1x32xf32>
    %219 = vector.shape_cast %218 : vector<1x1x32xf32> to vector<1x32xf32>
    %220 = vector.broadcast %219 : vector<1x32xf32> to vector<16x32xf32>
    %221 = arith.addf %217, %220 : vector<16x32xf32>
    %222 = vector.shape_cast %203 : vector<16x32xf32> to vector<2x8x32xf32>
    %223 = vector.shape_cast %212 : vector<16x32xf32> to vector<2x8x32xf32>
    %224 = tpu.concatenate %223, %223, %223, %223 in 1 : vector<2x8x32xf32>, vector<2x8x32xf32>, vector<2x8x32xf32>, vector<2x8x32xf32> -> vector<2x32x32xf32>
    %225 = vector.shape_cast %44 : vector<32x32xf32> to vector<1x32x32xf32>
    %226 = vector.broadcast %225 : vector<1x32x32xf32> to vector<2x32x32xf32>
    %227 = arith.mulf %224, %226 : vector<2x32x32xf32>
    %228 = vector.shape_cast %221 : vector<16x32xf32> to vector<2x8x32xf32>
    %229 = tpu.concatenate %228, %228, %228, %228 in 1 : vector<2x8x32xf32>, vector<2x8x32xf32>, vector<2x8x32xf32>, vector<2x8x32xf32> -> vector<2x32x32xf32>
    %230 = vector.shape_cast %44 : vector<32x32xf32> to vector<1x32x32xf32>
    %231 = vector.broadcast %230 : vector<1x32x32xf32> to vector<2x32x32xf32>
    %232 = arith.mulf %229, %231 : vector<2x32x32xf32>
    %233 = arith.truncf %222 : vector<2x8x32xf32> to vector<2x8x32xbf16>
    %234 = arith.truncf %227 : vector<2x32x32xf32> to vector<2x32x32xbf16>
    "tpu.trace_start"() <{level = 10 : i32, message = "bqd,bmd->bqm"}> : () -> ()
    %cst_112 = arith.constant dense<0.000000e+00> : vector<2x8x32xf32>
    %235 = tpu.matmul %233, %234, %cst_112 {dimension_numbers = #tpu.dot_dimension_numbers<[2], [2], [1], [1], [0, 0, 0, 1, 1, 1], [0], [0]>} : vector<2x8x32xbf16>, vector<2x32x32xbf16>, vector<2x8x32xf32> -> vector<2x8x32xf32>
    "tpu.trace_stop"() : () -> ()
    %cst_113 = arith.constant 0.353553385 : f32
    %236 = vector.broadcast %cst_113 : f32 to vector<2x8x32xf32>
    %237 = arith.mulf %235, %236 : vector<2x8x32xf32>
    %238 = vector.broadcast %7 : vector<2x1x32xf32> to vector<2x8x32xf32>
    %239 = arith.addf %237, %238 : vector<2x8x32xf32>
    %240 = math.exp %239 : vector<2x8x32xf32>
    %241 = vector.shape_cast %240 : vector<2x8x32xf32> to vector<16x32xf32>
    %cst_114 = arith.constant dense<0.000000e+00> : vector<16x32xf32>
    %242 = tpu.matmul %241, %45, %cst_114 {dimension_numbers = #tpu.dot_dimension_numbers<[1], [0], [0], [1], [0, 0, 1, 1], [], []>} : vector<16x32xf32>, vector<32x32xf32>, vector<16x32xf32> -> vector<16x32xf32>
    %243 = vector.shape_cast %242 : vector<16x32xf32> to vector<2x8x32xf32>
    %244 = tpu.reciprocal %243 {approx = true} : vector<2x8x32xf32> -> vector<2x8x32xf32>
    %245 = arith.mulf %240, %244 : vector<2x8x32xf32>
    %246 = arith.truncf %245 : vector<2x8x32xf32> to vector<2x8x32xbf16>
    %247 = arith.truncf %232 : vector<2x32x32xf32> to vector<2x32x32xbf16>
    "tpu.trace_start"() <{level = 10 : i32, message = "bqm,bmd->bqd"}> : () -> ()
    %cst_115 = arith.constant dense<0.000000e+00> : vector<2x8x32xf32>
    %248 = tpu.matmul %246, %247, %cst_115 {dimension_numbers = #tpu.dot_dimension_numbers<[2], [1], [1], [2], [0, 0, 0, 1, 1, 2], [0], [0]>} : vector<2x8x32xbf16>, vector<2x32x32xbf16>, vector<2x8x32xf32> -> vector<2x8x32xf32>
    "tpu.trace_stop"() : () -> ()
    %249 = vector.shape_cast %248 : vector<2x8x32xf32> to vector<16x32xf32>
    %c1_116 = arith.constant 1 : index
    %c0_117 = arith.constant 0 : index
    %c0_118 = arith.constant 0 : index
    %250 = vector.load %arg11[%c1_116, %c0_117, %c0_118] : memref<2x32x32xf32, #tpu.memory_space<vmem>>, vector<1x32x32xf32>
    %251 = vector.shape_cast %250 : vector<1x32x32xf32> to vector<32x32xf32>
    %252 = arith.truncf %249 : vector<16x32xf32> to vector<16x32xbf16>
    %253 = arith.truncf %251 : vector<32x32xf32> to vector<32x32xbf16>
    %cst_119 = arith.constant dense<0.000000e+00> : vector<16x32xf32>
    %254 = tpu.matmul %252, %253, %cst_119 {dimension_numbers = #tpu.dot_dimension_numbers<[1], [0], [0], [1], [0, 0, 1, 1], [], []>} : vector<16x32xbf16>, vector<32x32xbf16>, vector<16x32xf32> -> vector<16x32xf32>
    %c1_120 = arith.constant 1 : index
    %c0_121 = arith.constant 0 : index
    %c0_122 = arith.constant 0 : index
    %255 = vector.load %arg12[%c1_120, %c0_121, %c0_122] : memref<2x1x32xf32, #tpu.memory_space<vmem>>, vector<1x1x32xf32>
    %256 = vector.shape_cast %255 : vector<1x1x32xf32> to vector<1x32xf32>
    %257 = vector.broadcast %256 : vector<1x32xf32> to vector<16x32xf32>
    %258 = arith.addf %254, %257 : vector<16x32xf32>
    %259 = arith.addf %194, %258 : vector<16x32xf32>
    %c1_123 = arith.constant 1 : index
    %c0_124 = arith.constant 0 : index
    %c0_125 = arith.constant 0 : index
    %260 = vector.load %arg13[%c1_123, %c0_124, %c0_125] : memref<2x1x32xf32, #tpu.memory_space<vmem>>, vector<1x1x32xf32>
    %261 = vector.shape_cast %260 : vector<1x1x32xf32> to vector<1x32xf32>
    %c1_126 = arith.constant 1 : index
    %c0_127 = arith.constant 0 : index
    %c0_128 = arith.constant 0 : index
    %262 = vector.load %arg14[%c1_126, %c0_127, %c0_128] : memref<2x1x32xf32, #tpu.memory_space<vmem>>, vector<1x1x32xf32>
    %263 = vector.shape_cast %262 : vector<1x1x32xf32> to vector<1x32xf32>
    %cst_129 = arith.constant dense<0.000000e+00> : vector<16xf32>
    %264 = vector.multi_reduction <add>, %259, %cst_129 [1] : vector<16x32xf32> to vector<16xf32>
    %265 = vector.shape_cast %264 : vector<16xf32> to vector<16x1xf32>
    %cst_130 = arith.constant 3.200000e+01 : f32
    %266 = vector.broadcast %cst_130 : f32 to vector<16x1xf32>
    %267 = arith.divf %265, %266 : vector<16x1xf32>
    %268 = vector.broadcast %267 : vector<16x1xf32> to vector<16x32xf32>
    %269 = arith.subf %259, %268 : vector<16x32xf32>
    %270 = arith.mulf %269, %269 : vector<16x32xf32>
    %cst_131 = arith.constant dense<0.000000e+00> : vector<16xf32>
    %271 = vector.multi_reduction <add>, %270, %cst_131 [1] : vector<16x32xf32> to vector<16xf32>
    %272 = vector.shape_cast %271 : vector<16xf32> to vector<16x1xf32>
    %cst_132 = arith.constant 3.200000e+01 : f32
    %273 = vector.broadcast %cst_132 : f32 to vector<16x1xf32>
    %274 = arith.divf %272, %273 : vector<16x1xf32>
    %275 = vector.broadcast %267 : vector<16x1xf32> to vector<16x32xf32>
    %276 = arith.subf %259, %275 : vector<16x32xf32>
    %cst_133 = arith.constant 9.99999996E-13 : f32
    %277 = vector.broadcast %cst_133 : f32 to vector<16x1xf32>
    %278 = arith.addf %274, %277 : vector<16x1xf32>
    %279 = math.rsqrt %278 : vector<16x1xf32>
    %280 = vector.broadcast %279 : vector<16x1xf32> to vector<16x32xf32>
    %281 = arith.mulf %276, %280 : vector<16x32xf32>
    %282 = vector.broadcast %261 : vector<1x32xf32> to vector<16x32xf32>
    %283 = arith.mulf %281, %282 : vector<16x32xf32>
    %284 = vector.broadcast %263 : vector<1x32xf32> to vector<16x32xf32>
    %285 = arith.addf %283, %284 : vector<16x32xf32>
    %c1_134 = arith.constant 1 : index
    %c0_135 = arith.constant 0 : index
    %c0_136 = arith.constant 0 : index
    %286 = vector.load %arg15[%c1_134, %c0_135, %c0_136] : memref<2x32x64xf32, #tpu.memory_space<vmem>>, vector<1x32x64xf32>
    %287 = vector.shape_cast %286 : vector<1x32x64xf32> to vector<32x64xf32>
    %288 = arith.truncf %285 : vector<16x32xf32> to vector<16x32xbf16>
    %289 = arith.truncf %287 : vector<32x64xf32> to vector<32x64xbf16>
    %cst_137 = arith.constant dense<0.000000e+00> : vector<16x64xf32>
    %290 = tpu.matmul %288, %289, %cst_137 {dimension_numbers = #tpu.dot_dimension_numbers<[1], [0], [0], [1], [0, 0, 1, 1], [], []>} : vector<16x32xbf16>, vector<32x64xbf16>, vector<16x64xf32> -> vector<16x64xf32>
    %c1_138 = arith.constant 1 : index
    %c0_139 = arith.constant 0 : index
    %c0_140 = arith.constant 0 : index
    %291 = vector.load %arg16[%c1_138, %c0_139, %c0_140] : memref<2x1x64xf32, #tpu.memory_space<vmem>>, vector<1x1x64xf32>
    %292 = vector.shape_cast %291 : vector<1x1x64xf32> to vector<1x64xf32>
    %293 = vector.broadcast %292 : vector<1x64xf32> to vector<16x64xf32>
    %294 = arith.addf %290, %293 : vector<16x64xf32>
    %295 = arith.mulf %294, %294 : vector<16x64xf32>
    %296 = arith.mulf %294, %295 : vector<16x64xf32>
    %cst_141 = arith.constant 4.471500e-02 : f32
    %297 = vector.broadcast %cst_141 : f32 to vector<16x64xf32>
    %298 = arith.mulf %297, %296 : vector<16x64xf32>
    %299 = arith.addf %294, %298 : vector<16x64xf32>
    %cst_142 = arith.constant 0.797884583 : f32
    %300 = vector.broadcast %cst_142 : f32 to vector<16x64xf32>
    %301 = arith.mulf %300, %299 : vector<16x64xf32>
    %302 = math.tanh %301 : vector<16x64xf32>
    %cst_143 = arith.constant 1.000000e+00 : f32
    %303 = vector.broadcast %cst_143 : f32 to vector<16x64xf32>
    %304 = arith.addf %303, %302 : vector<16x64xf32>
    %cst_144 = arith.constant 5.000000e-01 : f32
    %305 = vector.broadcast %cst_144 : f32 to vector<16x64xf32>
    %306 = arith.mulf %305, %304 : vector<16x64xf32>
    %307 = arith.mulf %294, %306 : vector<16x64xf32>
    %c1_145 = arith.constant 1 : index
    %c0_146 = arith.constant 0 : index
    %c0_147 = arith.constant 0 : index
    %308 = vector.load %arg17[%c1_145, %c0_146, %c0_147] : memref<2x64x32xf32, #tpu.memory_space<vmem>>, vector<1x64x32xf32>
    %309 = vector.shape_cast %308 : vector<1x64x32xf32> to vector<64x32xf32>
    %310 = arith.truncf %307 : vector<16x64xf32> to vector<16x64xbf16>
    %311 = arith.truncf %309 : vector<64x32xf32> to vector<64x32xbf16>
    %cst_148 = arith.constant dense<0.000000e+00> : vector<16x32xf32>
    %312 = tpu.matmul %310, %311, %cst_148 {dimension_numbers = #tpu.dot_dimension_numbers<[1], [0], [0], [1], [0, 0, 1, 1], [], []>} : vector<16x64xbf16>, vector<64x32xbf16>, vector<16x32xf32> -> vector<16x32xf32>
    %c1_149 = arith.constant 1 : index
    %c0_150 = arith.constant 0 : index
    %c0_151 = arith.constant 0 : index
    %313 = vector.load %arg18[%c1_149, %c0_150, %c0_151] : memref<2x1x32xf32, #tpu.memory_space<vmem>>, vector<1x1x32xf32>
    %314 = vector.shape_cast %313 : vector<1x1x32xf32> to vector<1x32xf32>
    %315 = vector.broadcast %314 : vector<1x32xf32> to vector<16x32xf32>
    %316 = arith.addf %312, %315 : vector<16x32xf32>
    %317 = arith.addf %285, %316 : vector<16x32xf32>
    %c1_152 = arith.constant 1 : index
    %c0_153 = arith.constant 0 : index
    %c0_154 = arith.constant 0 : index
    %318 = vector.load %arg19[%c1_152, %c0_153, %c0_154] : memref<2x1x32xf32, #tpu.memory_space<vmem>>, vector<1x1x32xf32>
    %319 = vector.shape_cast %318 : vector<1x1x32xf32> to vector<1x32xf32>
    %c1_155 = arith.constant 1 : index
    %c0_156 = arith.constant 0 : index
    %c0_157 = arith.constant 0 : index
    %320 = vector.load %arg20[%c1_155, %c0_156, %c0_157] : memref<2x1x32xf32, #tpu.memory_space<vmem>>, vector<1x1x32xf32>
    %321 = vector.shape_cast %320 : vector<1x1x32xf32> to vector<1x32xf32>
    %cst_158 = arith.constant dense<0.000000e+00> : vector<16xf32>
    %322 = vector.multi_reduction <add>, %317, %cst_158 [1] : vector<16x32xf32> to vector<16xf32>
    %323 = vector.shape_cast %322 : vector<16xf32> to vector<16x1xf32>
    %cst_159 = arith.constant 3.200000e+01 : f32
    %324 = vector.broadcast %cst_159 : f32 to vector<16x1xf32>
    %325 = arith.divf %323, %324 : vector<16x1xf32>
    %326 = vector.broadcast %325 : vector<16x1xf32> to vector<16x32xf32>
    %327 = arith.subf %317, %326 : vector<16x32xf32>
    %328 = arith.mulf %327, %327 : vector<16x32xf32>
    %cst_160 = arith.constant dense<0.000000e+00> : vector<16xf32>
    %329 = vector.multi_reduction <add>, %328, %cst_160 [1] : vector<16x32xf32> to vector<16xf32>
    %330 = vector.shape_cast %329 : vector<16xf32> to vector<16x1xf32>
    %cst_161 = arith.constant 3.200000e+01 : f32
    %331 = vector.broadcast %cst_161 : f32 to vector<16x1xf32>
    %332 = arith.divf %330, %331 : vector<16x1xf32>
    %333 = vector.broadcast %325 : vector<16x1xf32> to vector<16x32xf32>
    %334 = arith.subf %317, %333 : vector<16x32xf32>
    %cst_162 = arith.constant 9.99999996E-13 : f32
    %335 = vector.broadcast %cst_162 : f32 to vector<16x1xf32>
    %336 = arith.addf %332, %335 : vector<16x1xf32>
    %337 = math.rsqrt %336 : vector<16x1xf32>
    %338 = vector.broadcast %337 : vector<16x1xf32> to vector<16x32xf32>
    %339 = arith.mulf %334, %338 : vector<16x32xf32>
    %340 = vector.broadcast %319 : vector<1x32xf32> to vector<16x32xf32>
    %341 = arith.mulf %339, %340 : vector<16x32xf32>
    %342 = vector.broadcast %321 : vector<1x32xf32> to vector<16x32xf32>
    %343 = arith.addf %341, %342 : vector<16x32xf32>
    %c0_163 = arith.constant 0 : index
    %c0_164 = arith.constant 0 : index
    %344 = vector.load %arg25[%c0_163, %c0_164] : memref<2x16xf32, #tpu.memory_space<vmem>>, vector<2x16xf32>
    %cst_165 = arith.constant dense<0.000000e+00> : vector<2x32xf32>
    %345 = tpu.matmul %344, %343, %cst_165 {dimension_numbers = #tpu.dot_dimension_numbers<[1], [0], [0], [1], [0, 0, 1, 1], [], []>} : vector<2x16xf32>, vector<16x32xf32>, vector<2x32xf32> -> vector<2x32xf32>
    %c0_166 = arith.constant 0 : index
    %c0_167 = arith.constant 0 : index
    %346 = vector.load %arg21[%c0_166, %c0_167] : memref<32x3xf32, #tpu.memory_space<vmem>>, vector<32x3xf32>
    %347 = arith.truncf %345 : vector<2x32xf32> to vector<2x32xbf16>
    %348 = arith.truncf %346 : vector<32x3xf32> to vector<32x3xbf16>
    %cst_168 = arith.constant dense<0.000000e+00> : vector<2x3xf32>
    %349 = tpu.matmul %347, %348, %cst_168 {dimension_numbers = #tpu.dot_dimension_numbers<[1], [0], [0], [1], [0, 0, 1, 1], [], []>} : vector<2x32xbf16>, vector<32x3xbf16>, vector<2x3xf32> -> vector<2x3xf32>
    %c0_169 = arith.constant 0 : index
    %c0_170 = arith.constant 0 : index
    %350 = vector.load %arg22[%c0_169, %c0_170] : memref<1x3xf32, #tpu.memory_space<vmem>>, vector<1x3xf32>
    %351 = vector.broadcast %350 : vector<1x3xf32> to vector<2x3xf32>
    %352 = arith.addf %349, %351 : vector<2x3xf32>
    %353 = arith.negf %352 : vector<2x3xf32>
    %354 = math.exp %353 : vector<2x3xf32>
    %cst_171 = arith.constant 1.000000e+00 : f32
    %355 = vector.broadcast %cst_171 : f32 to vector<2x3xf32>
    %356 = arith.addf %355, %354 : vector<2x3xf32>
    %357 = arith.divf %355, %356 : vector<2x3xf32>
    %c0_172 = arith.constant 0 : index
    %c0_173 = arith.constant 0 : index
    %358 = vector.load %arg26[%c0_172, %c0_173] : memref<2x3xf32, #tpu.memory_space<vmem>>, vector<2x3xf32>
    tpu.vector_store %arg26[%c0_172, %c0_173], %357 {strides = array<i32>} : memref<2x3xf32, #tpu.memory_space<vmem>>, vector<2x3xf32>,
    return
  }
}

</mosaic_0001>

<llo_original>
// kernel: custom_model2_forward.1
$region0: #{custom_model2_forward.1}
  #allocation0 [shape = 'u32[]', space=smem, size = 0x4, offset = 0x4, fixed_abs, tag = 'smem constant byte address 0x4 - core index']
  #allocation1 [shape = 'u32[144,128]{1,0:T(1,128)}', space=vmem, size = 0x12000, scoped, tag = 'internal scratch']
  %s0 = inlined_call_operand.hbm [shape: s32[2,8], index: 0, kind: input, shape index: {}]
  %s1 = inlined_call_operand.vmem [shape: f32[50,32], index: 1, kind: input, shape index: {}]
  %s2 = inlined_call_operand.hbm [shape: f32[8,32], index: 2, kind: input, shape index: {}]
  %s3 = inlined_call_operand.hbm [shape: f32[1,32], index: 3, kind: input, shape index: {}]
  %s4 = inlined_call_operand.hbm [shape: f32[1,32], index: 4, kind: input, shape index: {}]
  %s5 = inlined_call_operand.vmem [shape: f32[2,32,32], index: 5, kind: input, shape index: {}]
  %s6 = inlined_call_operand.hbm [shape: f32[2,1,32], index: 6, kind: input, shape index: {}]
  %s7 = inlined_call_operand.vmem [shape: f32[2,32,32], index: 7, kind: input, shape index: {}]
  %s8 = inlined_call_operand.hbm [shape: f32[2,1,32], index: 8, kind: input, shape index: {}]
  %s9 = inlined_call_operand.vmem [shape: f32[2,32,32], index: 9, kind: input, shape index: {}]
  %s10 = inlined_call_operand.hbm [shape: f32[2,1,32], index: 10, kind: input, shape index: {}]
  %s11 = inlined_call_operand.vmem [shape: f32[2,32,32], index: 11, kind: input, shape index: {}]
  %s12 = inlined_call_operand.hbm [shape: f32[2,1,32], index: 12, kind: input, shape index: {}]
  %s13 = inlined_call_operand.hbm [shape: f32[2,1,32], index: 13, kind: input, shape index: {}]
  %s14 = inlined_call_operand.hbm [shape: f32[2,1,32], index: 14, kind: input, shape index: {}]
  %s15 = inlined_call_operand.hbm [shape: f32[2,32,64], index: 15, kind: input, shape index: {}]
  %s16 = inlined_call_operand.hbm [shape: f32[2,1,64], index: 16, kind: input, shape index: {}]
  %s17 = inlined_call_operand.vmem [shape: f32[2,64,32], index: 17, kind: input, shape index: {}]
  %s18 = inlined_call_operand.hbm [shape: f32[2,1,32], index: 18, kind: input, shape index: {}]
  %s19 = inlined_call_operand.hbm [shape: f32[2,1,32], index: 19, kind: input, shape index: {}]
  %s20 = inlined_call_operand.hbm [shape: f32[2,1,32], index: 20, kind: input, shape index: {}]
  %s21 = inlined_call_operand.vmem [shape: f32[32,3], index: 21, kind: input, shape index: {}]
  %s22 = inlined_call_operand.hbm [shape: f32[1,3], index: 22, kind: input, shape index: {}]
  %s23 = inlined_call_operand.vmem [shape: f32[32,32], index: 23, kind: input, shape index: {}, may-alias: {23,24}]
  %s24 = inlined_call_operand.vmem [shape: f32[32,32], index: 24, kind: input, shape index: {}, may-alias: {23,24}]
  %s25 = inlined_call_operand.vmem [shape: f32[2,16], index: 25, kind: input, shape index: {}]
  %s26 = inlined_call_operand.hbm [shape: f32[2,3], index: 26, kind: output, shape index: {}]
  %s27 = sld [smem:[#allocation0]]
  $region178: #{custom_model2_forward.1} parent=0
    _
  %s29 = ssub.s32 1, %s27
  %s30 = scalar_select 0, %s29, %s27
  $region1: #{custom_model2_forward.1} parent=0
    #allocation2 [shape = 'u8[1024]{0}', space=vmem, size = 0x400, scoped, tag = 'input window, operand 0, single buffered']
    #allocation3 [shape = 's32[1]{0}', space=sflag, size = 0x4, scoped, tag = 'scoped memory for custom_model2_forward.1']
    #allocation4 [shape = 's32[1]{0}', space=sflag, size = 0x4, scoped, tag = 'scoped memory for custom_model2_forward.1']
    #allocation5 [shape = 'u8[4096]{0}', space=vmem, size = 0x1000, scoped, tag = 'input window, operand 2, single buffered']
    #allocation6 [shape = 's32[1]{0}', space=sflag, size = 0x4, scoped, tag = 'scoped memory for custom_model2_forward.1']
    #allocation7 [shape = 'u8[512]{0}', space=vmem, size = 0x400, scoped, tag = 'input window, operand 3, single buffered']
    #allocation8 [shape = 'u8[512]{0}', space=vmem, size = 0x400, scoped, tag = 'input window, operand 4, single buffered']
    #allocation9 [shape = 's32[1]{0}', space=sflag, size = 0x4, scoped, tag = 'scoped memory for custom_model2_forward.1']
    #allocation10 [shape = 'u8[1024]{0}', space=vmem, size = 0x400, scoped, tag = 'input window, operand 6, single buffered']
    #allocation11 [shape = 'u8[1024]{0}', space=vmem, size = 0x400, scoped, tag = 'input window, operand 8, single buffered']
    #allocation12 [shape = 's32[1]{0}', space=sflag, size = 0x4, scoped, tag = 'scoped memory for custom_model2_forward.1']
    #allocation13 [shape = 'u8[1024]{0}', space=vmem, size = 0x400, scoped, tag = 'input window, operand 10, single buffered']
    #allocation14 [shape = 'u8[1024]{0}', space=vmem, size = 0x400, scoped, tag = 'input window, operand 12, single buffered']
    #allocation15 [shape = 's32[1]{0}', space=sflag, size = 0x4, scoped, tag = 'scoped memory for custom_model2_forward.1']
    #allocation16 [shape = 'u8[1024]{0}', space=vmem, size = 0x400, scoped, tag = 'input window, operand 13, single buffered']
    #allocation17 [shape = 'u8[1024]{0}', space=vmem, size = 0x400, scoped, tag = 'input window, operand 14, single buffered']
    #allocation18 [shape = 's32[1]{0}', space=sflag, size = 0x4, scoped, tag = 'scoped memory for custom_model2_forward.1']
    #allocation19 [shape = 'u8[32768]{0}', space=vmem, size = 0x8000, scoped, tag = 'input window, operand 15, single buffered']
    #allocation20 [shape = 'u8[1024]{0}', space=vmem, size = 0x400, scoped, tag = 'input window, operand 16, single buffered']
    #allocation21 [shape = 's32[1]{0}', space=sflag, size = 0x4, scoped, tag = 'scoped memory for custom_model2_forward.1']
    #allocation22 [shape = 'u8[1024]{0}', space=vmem, size = 0x400, scoped, tag = 'input window, operand 18, single buffered']
    #allocation23 [shape = 'u8[1024]{0}', space=vmem, size = 0x400, scoped, tag = 'input window, operand 19, single buffered']
    #allocation24 [shape = 's32[1]{0}', space=sflag, size = 0x4, scoped, tag = 'scoped memory for custom_model2_forward.1']
    #allocation25 [shape = 'u8[1024]{0}', space=vmem, size = 0x400, scoped, tag = 'input window, operand 20, single buffered']
    #allocation26 [shape = 'u8[512]{0}', space=vmem, size = 0x400, scoped, tag = 'input window, operand 22, single buffered']
    #allocation27 [shape = 's32[1]{0}', space=sflag, size = 0x4, scoped, tag = 'scoped memory for custom_model2_forward.1']
    #allocation28 [shape = 'u8[1024]{0}', space=vmem, size = 0x400, scoped, tag = 'output window, operand 0, single buffered']
    %31 = vsyncpa [#allocation3], 0
    %32 = vsyncpa [#allocation6], 0
    %33 = vsyncpa [#allocation9], 0
    %34 = vsyncpa [#allocation12], 0
    %35 = vsyncpa [#allocation15], 0
    %36 = vsyncpa [#allocation18], 0
    %37 = vsyncpa [#allocation21], 0
    %38 = vsyncpa [#allocation24], 0
    %39 = vsyncpa [#allocation27], 0
    %40 = vsyncpa [#allocation4], 0
    // Predicated region
    $region2: #{custom_model2_forward.1} parent=1 // pred_check
      _
    $region3: #{custom_model2_forward.1} parent=1 // pred_check_branch
      %42 = sbr.rel (0) target = $region5
    $region4: #{custom_model2_forward.1} parent=1 // pred_region
      %s44 = ssub.s32 32, 32
      %45 = vsyncadd [#allocation3], %s44
      %s47 = sshll.u32 [#allocation2], 4
      %s48 = int_to_ptr.vmem [resolvable:$true] %s47
      %50 = dma.hbm_to_vmem [thread:$0]  %s0, 32, %s48, [#allocation3]
    $region5: #{custom_model2_forward.1} parent=1 // pred_fallthru
      _
    // Predicated region
    $region6: #{custom_model2_forward.1} parent=1 // pred_check
      _
    $region7: #{custom_model2_forward.1} parent=1 // pred_check_branch
      %52 = sbr.rel (0) target = $region9
    $region8: #{custom_model2_forward.1} parent=1 // pred_region
      _
    $region9: #{custom_model2_forward.1} parent=1 // pred_fallthru
      _
    // Predicated region
    $region10: #{custom_model2_forward.1} parent=1 // pred_check
      _
    $region11: #{custom_model2_forward.1} parent=1 // pred_check_branch
      %54 = sbr.rel (0) target = $region13
    $region12: #{custom_model2_forward.1} parent=1 // pred_region
      %s56 = ssub.s32 128, 128
      %57 = vsyncadd [#allocation6], %s56
      %s59 = sshll.u32 [#allocation5], 4
      %s60 = int_to_ptr.vmem [resolvable:$true] %s59
      %62 = dma.hbm_to_vmem [thread:$0]  %s2, 128, %s60, [#allocation6]
    $region13: #{custom_model2_forward.1} parent=1 // pred_fallthru
      _
    // Predicated region
    $region14: #{custom_model2_forward.1} parent=1 // pred_check
      _
    $region15: #{custom_model2_forward.1} parent=1 // pred_check_branch
      %64 = sbr.rel (0) target = $region17
    $region16: #{custom_model2_forward.1} parent=1 // pred_region
      %s66 = ssub.s32 16, 16
      %67 = vsyncadd [#allocation6], %s66
      %s69 = sshll.u32 [#allocation7], 4
      %s70 = int_to_ptr.vmem [resolvable:$true] %s69
      %72 = dma.hbm_to_vmem [thread:$0]  %s3, 16, %s70, [#allocation6]
    $region17: #{custom_model2_forward.1} parent=1 // pred_fallthru
      _
    // Predicated region
    $region18: #{custom_model2_forward.1} parent=1 // pred_check
      _
    $region19: #{custom_model2_forward.1} parent=1 // pred_check_branch
      %74 = sbr.rel (0) target = $region21
    $region20: #{custom_model2_forward.1} parent=1 // pred_region
      %s76 = ssub.s32 16, 16
      %77 = vsyncadd [#allocation9], %s76
      %s79 = sshll.u32 [#allocation8], 4
      %s80 = int_to_ptr.vmem [resolvable:$true] %s79
      %82 = dma.hbm_to_vmem [thread:$0]  %s4, 16, %s80, [#allocation9]
    $region21: #{custom_model2_forward.1} parent=1 // pred_fallthru
      _
    // Predicated region
    $region22: #{custom_model2_forward.1} parent=1 // pred_check
      _
    $region23: #{custom_model2_forward.1} parent=1 // pred_check_branch
      %84 = sbr.rel (0) target = $region25
    $region24: #{custom_model2_forward.1} parent=1 // pred_region
      _
    $region25: #{custom_model2_forward.1} parent=1 // pred_fallthru
      _
    // Predicated region
    $region26: #{custom_model2_forward.1} parent=1 // pred_check
      _
    $region27: #{custom_model2_forward.1} parent=1 // pred_check_branch
      %86 = sbr.rel (0) target = $region29
    $region28: #{custom_model2_forward.1} parent=1 // pred_region
      %s88 = ssub.s32 32, 32
      %89 = vsyncadd [#allocation9], %s88
      %s90 = sshll.u32 [#allocation10], 4
      %s91 = int_to_ptr.vmem [resolvable:$true] %s90
      %96 = dma.hbm_to_vmem [thread:$0]  %s6, 32, %s91, [#allocation9], 16, 16, 1
    $region29: #{custom_model2_forward.1} parent=1 // pred_fallthru
      _
    // Predicated region
    $region30: #{custom_model2_forward.1} parent=1 // pred_check
      _
    $region31: #{custom_model2_forward.1} parent=1 // pred_check_branch
      %98 = sbr.rel (0) target = $region33
    $region32: #{custom_model2_forward.1} parent=1 // pred_region
      _
    $region33: #{custom_model2_forward.1} parent=1 // pred_fallthru
      _
    // Predicated region
    $region34: #{custom_model2_forward.1} parent=1 // pred_check
      _
    $region35: #{custom_model2_forward.1} parent=1 // pred_check_branch
      %100 = sbr.rel (0) target = $region37
    $region36: #{custom_model2_forward.1} parent=1 // pred_region
      %s102 = ssub.s32 32, 32
      %103 = vsyncadd [#allocation12], %s102
      %s104 = sshll.u32 [#allocation11], 4
      %s105 = int_to_ptr.vmem [resolvable:$true] %s104
      %110 = dma.hbm_to_vmem [thread:$0]  %s8, 32, %s105, [#allocation12], 16, 16, 1
    $region37: #{custom_model2_forward.1} parent=1 // pred_fallthru
      _
    // Predicated region
    $region38: #{custom_model2_forward.1} parent=1 // pred_check
      _
    $region39: #{custom_model2_forward.1} parent=1 // pred_check_branch
      %112 = sbr.rel (0) target = $region41
    $region40: #{custom_model2_forward.1} parent=1 // pred_region
      _
    $region41: #{custom_model2_forward.1} parent=1 // pred_fallthru
      _
    // Predicated region
    $region42: #{custom_model2_forward.1} parent=1 // pred_check
      _
    $region43: #{custom_model2_forward.1} parent=1 // pred_check_branch
      %114 = sbr.rel (0) target = $region45
    $region44: #{custom_model2_forward.1} parent=1 // pred_region
      %s116 = ssub.s32 32, 32
      %117 = vsyncadd [#allocation12], %s116
      %s118 = sshll.u32 [#allocation13], 4
      %s119 = int_to_ptr.vmem [resolvable:$true] %s118
      %124 = dma.hbm_to_vmem [thread:$0]  %s10, 32, %s119, [#allocation12], 16, 16, 1
    $region45: #{custom_model2_forward.1} parent=1 // pred_fallthru
      _
    // Predicated region
    $region46: #{custom_model2_forward.1} parent=1 // pred_check
      _
    $region47: #{custom_model2_forward.1} parent=1 // pred_check_branch
      %126 = sbr.rel (0) target = $region49
    $region48: #{custom_model2_forward.1} parent=1 // pred_region
      _
    $region49: #{custom_model2_forward.1} parent=1 // pred_fallthru
      _
    // Predicated region
    $region50: #{custom_model2_forward.1} parent=1 // pred_check
      _
    $region51: #{custom_model2_forward.1} parent=1 // pred_check_branch
      %128 = sbr.rel (0) target = $region53
    $region52: #{custom_model2_forward.1} parent=1 // pred_region
      %s130 = ssub.s32 32, 32
      %131 = vsyncadd [#allocation15], %s130
      %s132 = sshll.u32 [#allocation14], 4
      %s133 = int_to_ptr.vmem [resolvable:$true] %s132
      %138 = dma.hbm_to_vmem [thread:$0]  %s12, 32, %s133, [#allocation15], 16, 16, 1
    $region53: #{custom_model2_forward.1} parent=1 // pred_fallthru
      _
    // Predicated region
    $region54: #{custom_model2_forward.1} parent=1 // pred_check
      _
    $region55: #{custom_model2_forward.1} parent=1 // pred_check_branch
      %140 = sbr.rel (0) target = $region57
    $region56: #{custom_model2_forward.1} parent=1 // pred_region
      %s142 = ssub.s32 32, 32
      %143 = vsyncadd [#allocation15], %s142
      %s144 = sshll.u32 [#allocation16], 4
      %s145 = int_to_ptr.vmem [resolvable:$true] %s144
      %150 = dma.hbm_to_vmem [thread:$0]  %s13, 32, %s145, [#allocation15], 16, 16, 1
    $region57: #{custom_model2_forward.1} parent=1 // pred_fallthru
      _
    // Predicated region
    $region58: #{custom_model2_forward.1} parent=1 // pred_check
      _
    $region59: #{custom_model2_forward.1} parent=1 // pred_check_branch
      %152 = sbr.rel (0) target = $region61
    $region60: #{custom_model2_forward.1} parent=1 // pred_region
      %s154 = ssub.s32 32, 32
      %155 = vsyncadd [#allocation18], %s154
      %s156 = sshll.u32 [#allocation17], 4
      %s157 = int_to_ptr.vmem [resolvable:$true] %s156
      %162 = dma.hbm_to_vmem [thread:$0]  %s14, 32, %s157, [#allocation18], 16, 16, 1
    $region61: #{custom_model2_forward.1} parent=1 // pred_fallthru
      _
    // Predicated region
    $region62: #{custom_model2_forward.1} parent=1 // pred_check
      _
    $region63: #{custom_model2_forward.1} parent=1 // pred_check_branch
      %164 = sbr.rel (0) target = $region65
    $region64: #{custom_model2_forward.1} parent=1 // pred_region
      %s166 = ssub.s32 1024, 1024
      %167 = vsyncadd [#allocation18], %s166
      %s168 = sshll.u32 [#allocation19], 4
      %s169 = int_to_ptr.vmem [resolvable:$true] %s168
      %174 = dma.hbm_to_vmem [thread:$0]  %s15, 1024, %s169, [#allocation18], 128, 128, 8
    $region65: #{custom_model2_forward.1} parent=1 // pred_fallthru
      _
    // Predicated region
    $region66: #{custom_model2_forward.1} parent=1 // pred_check
      _
    $region67: #{custom_model2_forward.1} parent=1 // pred_check_branch
      %176 = sbr.rel (0) target = $region69
    $region68: #{custom_model2_forward.1} parent=1 // pred_region
      %s178 = ssub.s32 32, 32
      %179 = vsyncadd [#allocation21], %s178
      %s180 = sshll.u32 [#allocation20], 4
      %s181 = int_to_ptr.vmem [resolvable:$true] %s180
      %186 = dma.hbm_to_vmem [thread:$0]  %s16, 32, %s181, [#allocation21], 16, 16, 1
    $region69: #{custom_model2_forward.1} parent=1 // pred_fallthru
      _
    // Predicated region
    $region70: #{custom_model2_forward.1} parent=1 // pred_check
      _
    $region71: #{custom_model2_forward.1} parent=1 // pred_check_branch
      %188 = sbr.rel (0) target = $region73
    $region72: #{custom_model2_forward.1} parent=1 // pred_region
      _
    $region73: #{custom_model2_forward.1} parent=1 // pred_fallthru
      _
    // Predicated region
    $region74: #{custom_model2_forward.1} parent=1 // pred_check
      _
    $region75: #{custom_model2_forward.1} parent=1 // pred_check_branch
      %190 = sbr.rel (0) target = $region77
    $region76: #{custom_model2_forward.1} parent=1 // pred_region
      %s192 = ssub.s32 32, 32
      %193 = vsyncadd [#allocation21], %s192
      %s194 = sshll.u32 [#allocation22], 4
      %s195 = int_to_ptr.vmem [resolvable:$true] %s194
      %200 = dma.hbm_to_vmem [thread:$0]  %s18, 32, %s195, [#allocation21], 16, 16, 1
    $region77: #{custom_model2_forward.1} parent=1 // pred_fallthru
      _
    // Predicated region
    $region78: #{custom_model2_forward.1} parent=1 // pred_check
      _
    $region79: #{custom_model2_forward.1} parent=1 // pred_check_branch
      %202 = sbr.rel (0) target = $region81
    $region80: #{custom_model2_forward.1} parent=1 // pred_region
      %s204 = ssub.s32 32, 32
      %205 = vsyncadd [#allocation24], %s204
      %s206 = sshll.u32 [#allocation23], 4
      %s207 = int_to_ptr.vmem [resolvable:$true] %s206
      %212 = dma.hbm_to_vmem [thread:$0]  %s19, 32, %s207, [#allocation24], 16, 16, 1
    $region81: #{custom_model2_forward.1} parent=1 // pred_fallthru
      _
    // Predicated region
    $region82: #{custom_model2_forward.1} parent=1 // pred_check
      _
    $region83: #{custom_model2_forward.1} parent=1 // pred_check_branch
      %214 = sbr.rel (0) target = $region85
    $region84: #{custom_model2_forward.1} parent=1 // pred_region
      %s216 = ssub.s32 32, 32
      %217 = vsyncadd [#allocation24], %s216
      %s218 = sshll.u32 [#allocation25], 4
      %s219 = int_to_ptr.vmem [resolvable:$true] %s218
      %224 = dma.hbm_to_vmem [thread:$0]  %s20, 32, %s219, [#allocation24], 16, 16, 1
    $region85: #{custom_model2_forward.1} parent=1 // pred_fallthru
      _
    // Predicated region
    $region86: #{custom_model2_forward.1} parent=1 // pred_check
      _
    $region87: #{custom_model2_forward.1} parent=1 // pred_check_branch
      %226 = sbr.rel (0) target = $region89
    $region88: #{custom_model2_forward.1} parent=1 // pred_region
      _
    $region89: #{custom_model2_forward.1} parent=1 // pred_fallthru
      _
    // Predicated region
    $region90: #{custom_model2_forward.1} parent=1 // pred_check
      _
    $region91: #{custom_model2_forward.1} parent=1 // pred_check_branch
      %228 = sbr.rel (0) target = $region93
    $region92: #{custom_model2_forward.1} parent=1 // pred_region
      %s230 = ssub.s32 16, 16
      %231 = vsyncadd [#allocation27], %s230
      %s233 = sshll.u32 [#allocation26], 4
      %s234 = int_to_ptr.vmem [resolvable:$true] %s233
      %236 = dma.hbm_to_vmem [thread:$0]  %s22, 16, %s234, [#allocation27]
    $region93: #{custom_model2_forward.1} parent=1 // pred_fallthru
      _
    // Predicated region
    $region94: #{custom_model2_forward.1} parent=1 // pred_check
      _
    $region95: #{custom_model2_forward.1} parent=1 // pred_check_branch
      %238 = sbr.rel (0) target = $region97
    $region96: #{custom_model2_forward.1} parent=1 // pred_region
      _
    $region97: #{custom_model2_forward.1} parent=1 // pred_fallthru
      _
    // Predicated region
    $region98: #{custom_model2_forward.1} parent=1 // pred_check
      _
    $region99: #{custom_model2_forward.1} parent=1 // pred_check_branch
      %240 = sbr.rel (0) target = $region101
    $region100: #{custom_model2_forward.1} parent=1 // pred_region
      _
    $region101: #{custom_model2_forward.1} parent=1 // pred_fallthru
      _
    // Predicated region
    $region102: #{custom_model2_forward.1} parent=1 // pred_check
      _
    $region103: #{custom_model2_forward.1} parent=1 // pred_check_branch
      %242 = sbr.rel (0) target = $region105
    $region104: #{custom_model2_forward.1} parent=1 // pred_region
      _
    $region105: #{custom_model2_forward.1} parent=1 // pred_fallthru
      _
    // Predicated region
    $region106: #{custom_model2_forward.1} parent=1 // pred_check
      _
    $region107: #{custom_model2_forward.1} parent=1 // pred_check_branch
      %244 = sbr.rel (0) target = $region109
    $region108: #{custom_model2_forward.1} parent=1 // pred_region
      %245 = dma.done [#allocation3], 32
    $region109: #{custom_model2_forward.1} parent=1 // pred_fallthru
      _
    // Predicated region
    $region110: #{custom_model2_forward.1} parent=1 // pred_check
      _
    $region111: #{custom_model2_forward.1} parent=1 // pred_check_branch
      %247 = sbr.rel (0) target = $region113
    $region112: #{custom_model2_forward.1} parent=1 // pred_region
      %248 = dma.done [#allocation6], 128
    $region113: #{custom_model2_forward.1} parent=1 // pred_fallthru
      _
    // Predicated region
    $region114: #{custom_model2_forward.1} parent=1 // pred_check
      _
    $region115: #{custom_model2_forward.1} parent=1 // pred_check_branch
      %250 = sbr.rel (0) target = $region117
    $region116: #{custom_model2_forward.1} parent=1 // pred_region
      %251 = dma.done [#allocation6], 16
    $region117: #{custom_model2_forward.1} parent=1 // pred_fallthru
      _
    // Predicated region
    $region118: #{custom_model2_forward.1} parent=1 // pred_check
      _
    $region119: #{custom_model2_forward.1} parent=1 // pred_check_branch
      %253 = sbr.rel (0) target = $region121
    $region120: #{custom_model2_forward.1} parent=1 // pred_region
      %254 = dma.done [#allocation9], 16
    $region121: #{custom_model2_forward.1} parent=1 // pred_fallthru
      _
    // Predicated region
    $region122: #{custom_model2_forward.1} parent=1 // pred_check
      _
    $region123: #{custom_model2_forward.1} parent=1 // pred_check_branch
      %256 = sbr.rel (0) target = $region125
    $region124: #{custom_model2_forward.1} parent=1 // pred_region
      %257 = dma.done [#allocation9], 32
    $region125: #{custom_model2_forward.1} parent=1 // pred_fallthru
      _
    // Predicated region
    $region126: #{custom_model2_forward.1} parent=1 // pred_check
      _
    $region127: #{custom_model2_forward.1} parent=1 // pred_check_branch
      %259 = sbr.rel (0) target = $region129
    $region128: #{custom_model2_forward.1} parent=1 // pred_region
      %260 = dma.done [#allocation12], 32
    $region129: #{custom_model2_forward.1} parent=1 // pred_fallthru
      _
    // Predicated region
    $region130: #{custom_model2_forward.1} parent=1 // pred_check
      _
    $region131: #{custom_model2_forward.1} parent=1 // pred_check_branch
      %262 = sbr.rel (0) target = $region133
    $region132: #{custom_model2_forward.1} parent=1 // pred_region
      %263 = dma.done [#allocation12], 32
    $region133: #{custom_model2_forward.1} parent=1 // pred_fallthru
      _
    // Predicated region
    $region134: #{custom_model2_forward.1} parent=1 // pred_check
      _
    $region135: #{custom_model2_forward.1} parent=1 // pred_check_branch
      %265 = sbr.rel (0) target = $region137
    $region136: #{custom_model2_forward.1} parent=1 // pred_region
      %266 = dma.done [#allocation15], 32
    $region137: #{custom_model2_forward.1} parent=1 // pred_fallthru
      _
    // Predicated region
    $region138: #{custom_model2_forward.1} parent=1 // pred_check
      _
    $region139: #{custom_model2_forward.1} parent=1 // pred_check_branch
      %268 = sbr.rel (0) target = $region141
    $region140: #{custom_model2_forward.1} parent=1 // pred_region
      %269 = dma.done [#allocation15], 32
    $region141: #{custom_model2_forward.1} parent=1 // pred_fallthru
      _
    // Predicated region
    $region142: #{custom_model2_forward.1} parent=1 // pred_check
      _
    $region143: #{custom_model2_forward.1} parent=1 // pred_check_branch
      %271 = sbr.rel (0) target = $region145
    $region144: #{custom_model2_forward.1} parent=1 // pred_region
      %272 = dma.done [#allocation18], 32
    $region145: #{custom_model2_forward.1} parent=1 // pred_fallthru
      _
    // Predicated region
    $region146: #{custom_model2_forward.1} parent=1 // pred_check
      _
    $region147: #{custom_model2_forward.1} parent=1 // pred_check_branch
      %274 = sbr.rel (0) target = $region149
    $region148: #{custom_model2_forward.1} parent=1 // pred_region
      %275 = dma.done [#allocation18], 1024
    $region149: #{custom_model2_forward.1} parent=1 // pred_fallthru
      _
    // Predicated region
    $region150: #{custom_model2_forward.1} parent=1 // pred_check
      _
    $region151: #{custom_model2_forward.1} parent=1 // pred_check_branch
      %277 = sbr.rel (0) target = $region153
    $region152: #{custom_model2_forward.1} parent=1 // pred_region
      %278 = dma.done [#allocation21], 32
    $region153: #{custom_model2_forward.1} parent=1 // pred_fallthru
      _
    // Predicated region
    $region154: #{custom_model2_forward.1} parent=1 // pred_check
      _
    $region155: #{custom_model2_forward.1} parent=1 // pred_check_branch
      %280 = sbr.rel (0) target = $region157
    $region156: #{custom_model2_forward.1} parent=1 // pred_region
      %281 = dma.done [#allocation21], 32
    $region157: #{custom_model2_forward.1} parent=1 // pred_fallthru
      _
    // Predicated region
    $region158: #{custom_model2_forward.1} parent=1 // pred_check
      _
    $region159: #{custom_model2_forward.1} parent=1 // pred_check_branch
      %283 = sbr.rel (0) target = $region161
    $region160: #{custom_model2_forward.1} parent=1 // pred_region
      %284 = dma.done [#allocation24], 32
    $region161: #{custom_model2_forward.1} parent=1 // pred_fallthru
      _
    // Predicated region
    $region162: #{custom_model2_forward.1} parent=1 // pred_check
      _
    $region163: #{custom_model2_forward.1} parent=1 // pred_check_branch
      %286 = sbr.rel (0) target = $region165
    $region164: #{custom_model2_forward.1} parent=1 // pred_region
      %287 = dma.done [#allocation24], 32
    $region165: #{custom_model2_forward.1} parent=1 // pred_fallthru
      _
    // Predicated region
    $region166: #{custom_model2_forward.1} parent=1 // pred_check
      _
    $region167: #{custom_model2_forward.1} parent=1 // pred_check_branch
      %289 = sbr.rel (0) target = $region169
    $region168: #{custom_model2_forward.1} parent=1 // pred_region
      %290 = dma.done [#allocation27], 16
    $region169: #{custom_model2_forward.1} parent=1 // pred_fallthru
      _
    %v292 = vld [vmem:[#allocation2] sm:$0x3]
    %vm293 = vcmp.eq.s32.totalorder %v292, 0
    %v294 = vsel %vm293, -1e+09, 0.0
    %296 = vrot.lane.b32.xlu0 %v294, 8
    %v297 = vpop.permute.xlu0 %296
    %299 = vrot.lane.b32.xlu0 %v294, 16
    %v300 = vpop.permute.xlu0 %299
    %302 = vrot.lane.b32.xlu0 %v294, 24
    %v303 = vpop.permute.xlu0 %302
    %vm305 = vcmask 64512
    %v306 = vsel %vm305, %v294, %v297
    %vm307 = vcmask 130048
    %v308 = vsel %vm307, %v306, %v300
    %vm309 = vcmask 195584
    %v310 = vsel %vm309, %v308, %v303
    %v313 = vunpack.c.l.s4 1966171168
    %v314 = vunpack.c.0.s8 %v313
    %v315 = vlaneseq
    %v316 = vshrl.u32 %v315, 7
    %v317 = vsub.s32 %v314, %v316
    %v318 = vrot.slane %v310, %v317
    %v319 = vcombine.high %v318, %v318
    %v321 = vunpack.c.l.s4 1966171168
    %v322 = vunpack.c.0.s8 %v321
    %v323 = vlaneseq
    %v324 = vshrl.u32 %v323, 7
    %v325 = vsub.s32 %v322, %v324
    %v326 = vrot.slane %v318, %v325
    %v328 = vunpack.c.l.s4 1966171168
    %v329 = vunpack.c.0.s8 %v328
    %v330 = vlaneseq
    %v331 = vshrl.u32 %v330, 7
    %v332 = vsub.s32 %v329, %v331
    %v333 = vrot.slane %v319, %v332
    %v334 = vlaneseq
    %v335 = vand.u32 %v334, 127
    %v336 = vlaneseq
    %v337 = vshrl.u32 %v336, 7
    %v338 = vsub.s32 0, %v337
    %v339 = vrot.slane %v292, %v338
    %341 = vbcast.lane.b32.xlu0 %v339, 256
    %v342 = vpop.permute.xlu0 %341
    %v343 = vlaneseq
    %v344 = vshrl.u32 %v343, 7
    %v345 = vsub.s32 1, %v344
    %v346 = vrot.slane %v292, %v345
    %348 = vbcast.lane.b32.xlu0 %v346, 256
    %v349 = vpop.permute.xlu0 %348
    %vm350 = vcmp.eq.s32.totalorder %v342, %v335
    %vm351 = vcmp.eq.s32.totalorder %v349, %v335
    %v352 = vsel %vm350, 1, 0
    %v353 = vsel %vm351, 1, 0
    %v354 = vcvt.s32.f32 %v352
    %v355 = vcvt.s32.f32 %v353
    %v356 = vld [vmem:[%s1] sm:$0xff]
    %v357 = vld [vmem:[%s1 + $0x8] sm:$0xff]
    %v358 = vld [vmem:[%s1 + $0x10] sm:$0xff]
    %v359 = vld [vmem:[%s1 + $0x18] sm:$0xff]
    %v360 = vld [vmem:[%s1 + $0x20] sm:$0xff]
    %v361 = vld [vmem:[%s1 + $0x28] sm:$0xff]
    %v362 = vld [vmem:[%s1 + $0x30] sm:$0x3]
    %v363 = vld [vmem:[#allocation5] sm:$0xff]
    %vm364 = vcmask 408576
    %v366 = vsel %vm364, %v354, 0
    %v369 = vsel %vm364, %v355, 0
    %vm371 = vcmask 1041408
    %v373 = vsel %vm371, %v362, 0
    %375 = vmatprep.subr.mxu0 0.0
    %376 = vmatpush1.msra.mxu0 %v356
    %377 = vmatprep.subr.mxu0 0.0
    %378 = vmatpush1.msra.mxu0 %v357
    %379 = vmatprep.subr.mxu0 0.0
    %380 = vmatpush1.msra.mxu0 %v358
    %381 = vmatprep.subr.mxu0 0.0
    %382 = vmatpush1.msra.mxu0 %v359
    %383 = vmatprep.subr.mxu0 0.0
    %384 = vmatpush1.msra.mxu0 %v360
    %385 = vmatprep.subr.mxu0 0.0
    %386 = vmatpush1.msra.mxu0 %v361
    %387 = vmatprep.subr.mxu0 0.0
    %388 = vmatpush1.msra.mxu0 %v373
    %389 = vmatprep.subr.mxu0 0.0
    %390 = vmatpush1.msra.mxu0 0.0
    %391 = vmatprep.subr.mxu0 0.0
    %392 = vmatpush1.msra.mxu0 0.0
    %393 = vmatprep.subr.mxu0 0.0
    %394 = vmatpush1.msra.mxu0 0.0
    %395 = vmatprep.subr.mxu0 0.0
    %396 = vmatpush1.msra.mxu0 0.0
    %397 = vmatprep.subr.mxu0 0.0
    %398 = vmatpush1.msra.mxu0 0.0
    %399 = vmatprep.subr.mxu0 0.0
    %400 = vmatpush1.msra.mxu0 0.0
    %401 = vmatprep.subr.mxu0 0.0
    %402 = vmatpush1.msra.mxu0 0.0
    %403 = vmatprep.subr.mxu0 0.0
    %404 = vmatpush1.msra.mxu0 0.0
    %405 = vmatprep.subr.mxu0 0.0
    %406 = vmatpush1.msra.mxu0 0.0
    %407 = vmatprep.subr.mxu0 0.0
    %408 = vmatpush1.msra.mxu0 0.0
    %409 = vmatprep.subr.mxu0 0.0
    %410 = vmatpush1.msra.mxu0 0.0
    %411 = vmatprep.subr.mxu0 0.0
    %412 = vmatpush1.msra.mxu0 0.0
    %413 = vmatprep.subr.mxu0 0.0
    %414 = vmatpush1.msra.mxu0 0.0
    %415 = vmatprep.subr.mxu0 0.0
    %416 = vmatpush1.msra.mxu0 0.0
    %417 = vmatprep.subr.mxu0 0.0
    %418 = vmatpush1.msra.mxu0 0.0
    %419 = vmatprep.subr.mxu0 0.0
    %420 = vmatpush1.msra.mxu0 0.0
    %421 = vmatprep.subr.mxu0 0.0
    %422 = vmatpush1.msra.mxu0 0.0
    %423 = vmatprep.subr.mxu0 0.0
    %424 = vmatpush1.msra.mxu0 0.0
    %425 = vmatprep.subr.mxu0 0.0
    %426 = vmatpush1.msra.mxu0 0.0
    %427 = vmatprep.subr.mxu0 0.0
    %428 = vmatpush1.msra.mxu0 0.0
    %429 = vmatprep.subr.mxu0 0.0
    %430 = vmatpush1.msra.mxu0 0.0
    %431 = vmatprep.subr.mxu0 0.0
    %432 = vmatpush1.msra.mxu0 0.0
    %433 = vmatprep.subr.mxu0 0.0
    %434 = vmatpush1.msra.mxu0 0.0
    %435 = vmatprep.subr.mxu0 0.0
    %436 = vmatpush1.msra.mxu0 0.0
    %437 = vmatprep.subr.mxu0 0.0
    %438 = vmatpush1.msra.mxu0 0.0
    %439 = vmatprep.mubr.f32.mxu0 0.0
    %440 = vmatmul.mubr.f32.gmra.mrb[0].mxu0 %v366
    %v441 = vpop.f32.mrb[0].mxu0
    %v442 = vadd.f32 %v363, %v441
    %v443 = vpop.f32.mrb[0].mxu0
    %444 = vmatprep.mubr.f32.mxu0 0.0
    %445 = vmatmul.mubr.f32.gmra.mrb[0].mxu0 %v369
    %v446 = vpop.f32.mrb[0].mxu0
    %v447 = vadd.f32 %v363, %v446
    %v448 = vpop.f32.mrb[0].mxu0
    %449 = vdwg.mxu0
    %v450 = vld [vmem:[#allocation7] sm:$0x1]
    %v451 = vld [vmem:[#allocation8] sm:$0x1]
    %vm452 = vcmask 261120
    %v453 = vsel %vm452, %v442, 0.0
    %454 = vadd.xlane.f32.xlu0 %v453
    %v455 = vpop.xlane.xlu0 %454
    %v456 = vsel %vm452, %v447, 0.0
    %457 = vadd.xlane.f32.xlu0 %v456
    %v458 = vpop.xlane.xlu0 %457
    %v459 = vrcp.pop 32.0
    %v460 = vmul.f32 %v455, %v459
    %v461 = vmul.f32 %v458, %v459
    %v462 = vsub.f32 %v442, %v460
    %v463 = vsub.f32 %v447, %v461
    %v464 = vmul.f32 %v462, %v462
    %v465 = vmul.f32 %v463, %v463
    %v466 = vsel %vm452, %v464, 0.0
    %467 = vadd.xlane.f32.xlu0 %v466
    %v468 = vpop.xlane.xlu0 %467
    %v469 = vsel %vm452, %v465, 0.0
    %470 = vadd.xlane.f32.xlu0 %v469
    %v471 = vpop.xlane.xlu0 %470
    %v472 = vmul.f32 %v468, %v459
    %v473 = vmul.f32 %v471, %v459
    %v474 = vadd.f32 %v472, 1e-12
    %v475 = vadd.f32 %v473, 1e-12
    %v476 = vrsqrt.pop %v474
    %v477 = vrsqrt.pop %v475
    %v478 = vmul.f32 %v462, %v476
    %v479 = vmul.f32 %v463, %v477
    %v481 = vlaneseq
    %v482 = vshrl.u32 %v481, 7
    %v483 = vsub.s32 0, %v482
    %v484 = vrot.slane %v450, %v483
    %v486 = vmul.f32 %v478, %v484
    %v487 = vmul.f32 %v479, %v484
    %v489 = vlaneseq
    %v490 = vshrl.u32 %v489, 7
    %v491 = vsub.s32 0, %v490
    %v492 = vrot.slane %v451, %v491
    %v494 = vadd.f32 %v486, %v492
    %v495 = vadd.f32 %v487, %v492
    %v496 = vld [vmem:[%s23] sm:$0xff]
    %v497 = vld [vmem:[%s23 + $0x8] sm:$0xff]
    %v498 = vld [vmem:[%s23 + $0x10] sm:$0xff]
    %v499 = vld [vmem:[%s23 + $0x18] sm:$0xff]
    %v500 = vld [vmem:[%s24] sm:$0xff]
    %v501 = vld [vmem:[%s24 + $0x8] sm:$0xff]
    %v502 = vld [vmem:[%s24 + $0x10] sm:$0xff]
    %v503 = vld [vmem:[%s24 + $0x18] sm:$0xff]
    %v504 = vld [vmem:[%s5] sm:$0xff]
    %v505 = vld [vmem:[%s5 + $0x8] sm:$0xff]
    %v506 = vld [vmem:[%s5 + $0x10] sm:$0xff]
    %v507 = vld [vmem:[%s5 + $0x18] sm:$0xff]
    %v508 = vpack.c.bf16 %v495, %v494
    %v509 = vpack.c.bf16 %v505, %v504
    %v510 = vpack.c.bf16 %v507, %v506
    %v511 = vld [vmem:[#allocation10] sm:$0x1]
    %v513 = vlaneseq
    %v514 = vshrl.u32 %v513, 7
    %v515 = vsub.s32 0, %v514
    %v516 = vrot.slane %v511, %v515
    %v519 = vsel %vm452, %v508, 0
    %521 = vmatprep.subr.bf16.mxu0 0
    %522 = vmatpush1.bf16.msra.mxu0 %v509
    %523 = vmatprep.subr.bf16.mxu0 0
    %524 = vmatpush1.bf16.msra.mxu0 %v510
    %525 = vmatprep.subr.bf16.mxu0 0
    %526 = vmatpush1.bf16.msra.mxu0 0
    %527 = vmatprep.subr.bf16.mxu0 0
    %528 = vmatpush1.bf16.msra.mxu0 0
    %529 = vmatprep.subr.bf16.mxu0 0
    %530 = vmatpush1.bf16.msra.mxu0 0
    %531 = vmatprep.subr.bf16.mxu0 0
    %532 = vmatpush1.bf16.msra.mxu0 0
    %533 = vmatprep.subr.bf16.mxu0 0
    %534 = vmatpush1.bf16.msra.mxu0 0
    %535 = vmatprep.subr.bf16.mxu0 0
    %536 = vmatpush1.bf16.msra.mxu0 0
    %537 = vmatprep.subr.bf16.mxu0 0
    %538 = vmatpush1.bf16.msra.mxu0 0
    %539 = vmatprep.subr.bf16.mxu0 0
    %540 = vmatpush1.bf16.msra.mxu0 0
    %541 = vmatprep.subr.bf16.mxu0 0
    %542 = vmatpush1.bf16.msra.mxu0 0
    %543 = vmatprep.subr.bf16.mxu0 0
    %544 = vmatpush1.bf16.msra.mxu0 0
    %545 = vmatprep.subr.bf16.mxu0 0
    %546 = vmatpush1.bf16.msra.mxu0 0
    %547 = vmatprep.subr.bf16.mxu0 0
    %548 = vmatpush1.bf16.msra.mxu0 0
    %549 = vmatprep.subr.bf16.mxu0 0
    %550 = vmatpush1.bf16.msra.mxu0 0
    %551 = vmatprep.subr.bf16.mxu0 0
    %552 = vmatpush1.bf16.msra.mxu0 0
    %553 = vmatprep.mubr.bf16.mxu0 0
    %554 = vmatmul.mubr.bf16.gmra.mrb[0].mxu0 %v519
    %v555 = vpop.f32.mrb[0].mxu0
    %v556 = vadd.f32 %v516, %v555
    %v557 = vpop.f32.mrb[0].mxu0
    %v558 = vpop.f32.mrb[0].mxu0
    %v559 = vadd.f32 %v516, %v558
    %v560 = vpop.f32.mrb[0].mxu0
    %561 = vdwg.mxu0
    %v562 = vld [vmem:[%s7] sm:$0xff]
    %v563 = vld [vmem:[%s7 + $0x8] sm:$0xff]
    %v564 = vld [vmem:[%s7 + $0x10] sm:$0xff]
    %v565 = vld [vmem:[%s7 + $0x18] sm:$0xff]
    %v566 = vpack.c.bf16 %v563, %v562
    %v567 = vpack.c.bf16 %v565, %v564
    %v568 = vld [vmem:[#allocation11] sm:$0x1]
    %v570 = vlaneseq
    %v571 = vshrl.u32 %v570, 7
    %v572 = vsub.s32 0, %v571
    %v573 = vrot.slane %v568, %v572
    %575 = vmatprep.subr.bf16.mxu0 0
    %576 = vmatpush1.bf16.msra.mxu0 %v566
    %577 = vmatprep.subr.bf16.mxu0 0
    %578 = vmatpush1.bf16.msra.mxu0 %v567
    %579 = vmatprep.subr.bf16.mxu0 0
    %580 = vmatpush1.bf16.msra.mxu0 0
    %581 = vmatprep.subr.bf16.mxu0 0
    %582 = vmatpush1.bf16.msra.mxu0 0
    %583 = vmatprep.subr.bf16.mxu0 0
    %584 = vmatpush1.bf16.msra.mxu0 0
    %585 = vmatprep.subr.bf16.mxu0 0
    %586 = vmatpush1.bf16.msra.mxu0 0
    %587 = vmatprep.subr.bf16.mxu0 0
    %588 = vmatpush1.bf16.msra.mxu0 0
    %589 = vmatprep.subr.bf16.mxu0 0
    %590 = vmatpush1.bf16.msra.mxu0 0
    %591 = vmatprep.subr.bf16.mxu0 0
    %592 = vmatpush1.bf16.msra.mxu0 0
    %593 = vmatprep.subr.bf16.mxu0 0
    %594 = vmatpush1.bf16.msra.mxu0 0
    %595 = vmatprep.subr.bf16.mxu0 0
    %596 = vmatpush1.bf16.msra.mxu0 0
    %597 = vmatprep.subr.bf16.mxu0 0
    %598 = vmatpush1.bf16.msra.mxu0 0
    %599 = vmatprep.subr.bf16.mxu0 0
    %600 = vmatpush1.bf16.msra.mxu0 0
    %601 = vmatprep.subr.bf16.mxu0 0
    %602 = vmatpush1.bf16.msra.mxu0 0
    %603 = vmatprep.subr.bf16.mxu0 0
    %604 = vmatpush1.bf16.msra.mxu0 0
    %605 = vmatprep.subr.bf16.mxu0 0
    %606 = vmatpush1.bf16.msra.mxu0 0
    %607 = vmatprep.mubr.bf16.mxu0 0
    %608 = vmatmul.mubr.bf16.gmra.mrb[0].mxu0 %v519
    %v609 = vpop.f32.mrb[0].mxu0
    %v610 = vadd.f32 %v573, %v609
    %v611 = vpop.f32.mrb[0].mxu0
    %v612 = vpop.f32.mrb[0].mxu0
    %v613 = vadd.f32 %v573, %v612
    %v614 = vpop.f32.mrb[0].mxu0
    %615 = vdwg.mxu0
    %v616 = vld [vmem:[%s9] sm:$0xff]
    %v617 = vld [vmem:[%s9 + $0x8] sm:$0xff]
    %v618 = vld [vmem:[%s9 + $0x10] sm:$0xff]
    %v619 = vld [vmem:[%s9 + $0x18] sm:$0xff]
    %v620 = vpack.c.bf16 %v617, %v616
    %v621 = vpack.c.bf16 %v619, %v618
    %v622 = vld [vmem:[#allocation13] sm:$0x1]
    %v624 = vlaneseq
    %v625 = vshrl.u32 %v624, 7
    %v626 = vsub.s32 0, %v625
    %v627 = vrot.slane %v622, %v626
    %629 = vmatprep.subr.bf16.mxu0 0
    %630 = vmatpush1.bf16.msra.mxu0 %v620
    %631 = vmatprep.subr.bf16.mxu0 0
    %632 = vmatpush1.bf16.msra.mxu0 %v621
    %633 = vmatprep.subr.bf16.mxu0 0
    %634 = vmatpush1.bf16.msra.mxu0 0
    %635 = vmatprep.subr.bf16.mxu0 0
    %636 = vmatpush1.bf16.msra.mxu0 0
    %637 = vmatprep.subr.bf16.mxu0 0
    %638 = vmatpush1.bf16.msra.mxu0 0
    %639 = vmatprep.subr.bf16.mxu0 0
    %640 = vmatpush1.bf16.msra.mxu0 0
    %641 = vmatprep.subr.bf16.mxu0 0
    %642 = vmatpush1.bf16.msra.mxu0 0
    %643 = vmatprep.subr.bf16.mxu0 0
    %644 = vmatpush1.bf16.msra.mxu0 0
    %645 = vmatprep.subr.bf16.mxu0 0
    %646 = vmatpush1.bf16.msra.mxu0 0
    %647 = vmatprep.subr.bf16.mxu0 0
    %648 = vmatpush1.bf16.msra.mxu0 0
    %649 = vmatprep.subr.bf16.mxu0 0
    %650 = vmatpush1.bf16.msra.mxu0 0
    %651 = vmatprep.subr.bf16.mxu0 0
    %652 = vmatpush1.bf16.msra.mxu0 0
    %653 = vmatprep.subr.bf16.mxu0 0
    %654 = vmatpush1.bf16.msra.mxu0 0
    %655 = vmatprep.subr.bf16.mxu0 0
    %656 = vmatpush1.bf16.msra.mxu0 0
    %657 = vmatprep.subr.bf16.mxu0 0
    %658 = vmatpush1.bf16.msra.mxu0 0
    %659 = vmatprep.subr.bf16.mxu0 0
    %660 = vmatpush1.bf16.msra.mxu0 0
    %661 = vmatprep.mubr.bf16.mxu0 0
    %662 = vmatmul.mubr.bf16.gmra.mrb[0].mxu0 %v519
    %v663 = vpop.f32.mrb[0].mxu0
    %v664 = vadd.f32 %v627, %v663
    %v665 = vpop.f32.mrb[0].mxu0
    %v666 = vpop.f32.mrb[0].mxu0
    %v667 = vadd.f32 %v627, %v666
    %v668 = vpop.f32.mrb[0].mxu0
    %669 = vdwg.mxu0
    %v670 = vmul.f32 %v610, %v496
    %v671 = vmul.f32 %v610, %v497
    %v672 = vmul.f32 %v610, %v498
    %v673 = vmul.f32 %v610, %v499
    %v674 = vmul.f32 %v613, %v496
    %v675 = vmul.f32 %v613, %v497
    %v676 = vmul.f32 %v613, %v498
    %v677 = vmul.f32 %v613, %v499
    %v678 = vmul.f32 %v664, %v496
    %v679 = vmul.f32 %v664, %v497
    %v680 = vmul.f32 %v664, %v498
    %v681 = vmul.f32 %v664, %v499
    %v682 = vmul.f32 %v667, %v496
    %v683 = vmul.f32 %v667, %v497
    %v684 = vmul.f32 %v667, %v498
    %v685 = vmul.f32 %v667, %v499
    %v686 = vpack.c.bf16 %v556, %v556
    %v687 = vpack.c.bf16 %v559, %v559
    %v688 = vpack.c.bf16 %v671, %v670
    %v689 = vpack.c.bf16 %v673, %v672
    %v690 = vpack.c.bf16 %v675, %v674
    %v691 = vpack.c.bf16 %v677, %v676
    %v693 = vsel %vm452, %v686, 0
    %v696 = vsel %vm452, %v688, 0
    %v699 = vsel %vm452, %v689, 0
    %701 = vmatprep.subr.bf16.mxu0 0
    %702 = vmatpush1.bf16.xpose.msra.mxu0 %v696
    %703 = vmatprep.subr.bf16.mxu0 0
    %704 = vmatpush1.bf16.xpose.msra.mxu0 %v699
    %705 = vmatprep.subr.bf16.mxu0 0
    %706 = vmatpush1.bf16.xpose.msra.mxu0 0
    %707 = vmatprep.subr.bf16.mxu0 0
    %708 = vmatpush1.bf16.xpose.msra.mxu0 0
    %709 = vmatprep.subr.bf16.mxu0 0
    %710 = vmatpush1.bf16.xpose.msra.mxu0 0
    %711 = vmatprep.subr.bf16.mxu0 0
    %712 = vmatpush1.bf16.xpose.msra.mxu0 0
    %713 = vmatprep.subr.bf16.mxu0 0
    %714 = vmatpush1.bf16.xpose.msra.mxu0 0
    %715 = vmatprep.subr.bf16.mxu0 0
    %716 = vmatpush1.bf16.xpose.msra.mxu0 0
    %717 = vmatprep.subr.bf16.mxu0 0
    %718 = vmatpush1.bf16.xpose.msra.mxu0 0
    %719 = vmatprep.subr.bf16.mxu0 0
    %720 = vmatpush1.bf16.xpose.msra.mxu0 0
    %721 = vmatprep.subr.bf16.mxu0 0
    %722 = vmatpush1.bf16.xpose.msra.mxu0 0
    %723 = vmatprep.subr.bf16.mxu0 0
    %724 = vmatpush1.bf16.xpose.msra.mxu0 0
    %725 = vmatprep.subr.bf16.mxu0 0
    %726 = vmatpush1.bf16.xpose.msra.mxu0 0
    %727 = vmatprep.subr.bf16.mxu0 0
    %728 = vmatpush1.bf16.xpose.msra.mxu0 0
    %729 = vmatprep.subr.bf16.mxu0 0
    %730 = vmatpush1.bf16.xpose.msra.mxu0 0
    %731 = vmatprep.subr.bf16.mxu0 0
    %732 = vmatpush1.bf16.xpose.msra.mxu0 0
    %733 = vmatprep.mubr.bf16.mxu0 0
    %734 = vmatmul.mubr.bf16.gmra.mrb[0].mxu0 %v693
    %v735 = vpop.f32.mrb[0].mxu0
    %v736 = vadd.f32 0.0, %v735
    %v737 = vpop.f32.mrb[0].mxu0
    %v738 = vpop.f32.mrb[0].mxu0
    %v739 = vpop.f32.mrb[0].mxu0
    %740 = vdwg.mxu0
    %v742 = vsel %vm452, %v687, 0
    %v745 = vsel %vm452, %v690, 0
    %v748 = vsel %vm452, %v691, 0
    %750 = vmatprep.subr.bf16.mxu0 0
    %751 = vmatpush1.bf16.xpose.msra.mxu0 %v745
    %752 = vmatprep.subr.bf16.mxu0 0
    %753 = vmatpush1.bf16.xpose.msra.mxu0 %v748
    %754 = vmatprep.subr.bf16.mxu0 0
    %755 = vmatpush1.bf16.xpose.msra.mxu0 0
    %756 = vmatprep.subr.bf16.mxu0 0
    %757 = vmatpush1.bf16.xpose.msra.mxu0 0
    %758 = vmatprep.subr.bf16.mxu0 0
    %759 = vmatpush1.bf16.xpose.msra.mxu0 0
    %760 = vmatprep.subr.bf16.mxu0 0
    %761 = vmatpush1.bf16.xpose.msra.mxu0 0
    %762 = vmatprep.subr.bf16.mxu0 0
    %763 = vmatpush1.bf16.xpose.msra.mxu0 0
    %764 = vmatprep.subr.bf16.mxu0 0
    %765 = vmatpush1.bf16.xpose.msra.mxu0 0
    %766 = vmatprep.subr.bf16.mxu0 0
    %767 = vmatpush1.bf16.xpose.msra.mxu0 0
    %768 = vmatprep.subr.bf16.mxu0 0
    %769 = vmatpush1.bf16.xpose.msra.mxu0 0
    %770 = vmatprep.subr.bf16.mxu0 0
    %771 = vmatpush1.bf16.xpose.msra.mxu0 0
    %772 = vmatprep.subr.bf16.mxu0 0
    %773 = vmatpush1.bf16.xpose.msra.mxu0 0
    %774 = vmatprep.subr.bf16.mxu0 0
    %775 = vmatpush1.bf16.xpose.msra.mxu0 0
    %776 = vmatprep.subr.bf16.mxu0 0
    %777 = vmatpush1.bf16.xpose.msra.mxu0 0
    %778 = vmatprep.subr.bf16.mxu0 0
    %779 = vmatpush1.bf16.xpose.msra.mxu0 0
    %780 = vmatprep.subr.bf16.mxu0 0
    %781 = vmatpush1.bf16.xpose.msra.mxu0 0
    %782 = vmatprep.mubr.bf16.mxu0 0
    %783 = vmatmul.mubr.bf16.gmra.mrb[0].mxu0 %v742
    %v784 = vpop.f32.mrb[0].mxu0
    %v785 = vadd.f32 0.0, %v784
    %v786 = vpop.f32.mrb[0].mxu0
    %v787 = vpop.f32.mrb[0].mxu0
    %v788 = vpop.f32.mrb[0].mxu0
    %789 = vdwg.mxu0
    %v790 = vmul.f32 %v736, 0.35355338
    %v791 = vmul.f32 %v785, 0.35355338
    %v792 = vlaneseq
    %v793 = vshrl.u32 %v792, 7
    %v794 = vsub.s32 0, %v793
    %v795 = vrot.slane %v326, %v794
    %v796 = vlaneseq
    %v797 = vshrl.u32 %v796, 7
    %v798 = vsub.s32 0, %v797
    %v799 = vrot.slane %v333, %v798
    %v802 = vadd.f32 %v790, %v795
    %v803 = vadd.f32 %v791, %v799
    %v804 = vmul.f32 %v802, 1.442695
    %v805 = vpow.pop %v804
    %v806 = vmul.f32 %v803, 1.442695
    %v807 = vpow.pop %v806
    %v809 = vsel %vm452, %v805, 0
    %v812 = vsel %vm452, %v807, 0
    %814 = vmatprep.subr.mxu0 0.0
    %815 = vmatpush1.msra.mxu0 %v500
    %816 = vmatprep.subr.mxu0 0.0
    %817 = vmatpush1.msra.mxu0 %v501
    %818 = vmatprep.subr.mxu0 0.0
    %819 = vmatpush1.msra.mxu0 %v502
    %820 = vmatprep.subr.mxu0 0.0
    %821 = vmatpush1.msra.mxu0 %v503
    %822 = vmatprep.subr.mxu0 0.0
    %823 = vmatpush1.msra.mxu0 0.0
    %824 = vmatprep.subr.mxu0 0.0
    %825 = vmatpush1.msra.mxu0 0.0
    %826 = vmatprep.subr.mxu0 0.0
    %827 = vmatpush1.msra.mxu0 0.0
    %828 = vmatprep.subr.mxu0 0.0
    %829 = vmatpush1.msra.mxu0 0.0
    %830 = vmatprep.subr.mxu0 0.0
    %831 = vmatpush1.msra.mxu0 0.0
    %832 = vmatprep.subr.mxu0 0.0
    %833 = vmatpush1.msra.mxu0 0.0
    %834 = vmatprep.subr.mxu0 0.0
    %835 = vmatpush1.msra.mxu0 0.0
    %836 = vmatprep.subr.mxu0 0.0
    %837 = vmatpush1.msra.mxu0 0.0
    %838 = vmatprep.subr.mxu0 0.0
    %839 = vmatpush1.msra.mxu0 0.0
    %840 = vmatprep.subr.mxu0 0.0
    %841 = vmatpush1.msra.mxu0 0.0
    %842 = vmatprep.subr.mxu0 0.0
    %843 = vmatpush1.msra.mxu0 0.0
    %844 = vmatprep.subr.mxu0 0.0
    %845 = vmatpush1.msra.mxu0 0.0
    %846 = vmatprep.subr.mxu0 0.0
    %847 = vmatpush1.msra.mxu0 0.0
    %848 = vmatprep.subr.mxu0 0.0
    %849 = vmatpush1.msra.mxu0 0.0
    %850 = vmatprep.subr.mxu0 0.0
    %851 = vmatpush1.msra.mxu0 0.0
    %852 = vmatprep.subr.mxu0 0.0
    %853 = vmatpush1.msra.mxu0 0.0
    %854 = vmatprep.subr.mxu0 0.0
    %855 = vmatpush1.msra.mxu0 0.0
    %856 = vmatprep.subr.mxu0 0.0
    %857 = vmatpush1.msra.mxu0 0.0
    %858 = vmatprep.subr.mxu0 0.0
    %859 = vmatpush1.msra.mxu0 0.0
    %860 = vmatprep.subr.mxu0 0.0
    %861 = vmatpush1.msra.mxu0 0.0
    %862 = vmatprep.subr.mxu0 0.0
    %863 = vmatpush1.msra.mxu0 0.0
    %864 = vmatprep.subr.mxu0 0.0
    %865 = vmatpush1.msra.mxu0 0.0
    %866 = vmatprep.subr.mxu0 0.0
    %867 = vmatpush1.msra.mxu0 0.0
    %868 = vmatprep.subr.mxu0 0.0
    %869 = vmatpush1.msra.mxu0 0.0
    %870 = vmatprep.subr.mxu0 0.0
    %871 = vmatpush1.msra.mxu0 0.0
    %872 = vmatprep.subr.mxu0 0.0
    %873 = vmatpush1.msra.mxu0 0.0
    %874 = vmatprep.subr.mxu0 0.0
    %875 = vmatpush1.msra.mxu0 0.0
    %876 = vmatprep.subr.mxu0 0.0
    %877 = vmatpush1.msra.mxu0 0.0
    %878 = vmatprep.mubr.f32.mxu0 0.0
    %879 = vmatmul.mubr.f32.gmra.mrb[0].mxu0 %v809
    %v880 = vpop.f32.mrb[0].mxu0
    %v881 = vadd.f32 0.0, %v880
    %v882 = vpop.f32.mrb[0].mxu0
    %883 = vmatprep.mubr.f32.mxu0 0.0
    %884 = vmatmul.mubr.f32.gmra.mrb[0].mxu0 %v812
    %v885 = vpop.f32.mrb[0].mxu0
    %v886 = vadd.f32 0.0, %v885
    %v887 = vpop.f32.mrb[0].mxu0
    %888 = vdwg.mxu0
    %v889 = vrcp.pop %v881
    %v890 = vrcp.pop %v886
    %v891 = vmul.f32 %v805, %v889
    %v892 = vmul.f32 %v807, %v890
    %v893 = vpack.c.bf16 %v891, %v891
    %v894 = vpack.c.bf16 %v892, %v892
    %v895 = vpack.c.bf16 %v679, %v678
    %v896 = vpack.c.bf16 %v681, %v680
    %v897 = vpack.c.bf16 %v683, %v682
    %v898 = vpack.c.bf16 %v685, %v684
    %v900 = vsel %vm452, %v893, 0
    %902 = vmatprep.subr.bf16.mxu0 0
    %903 = vmatpush1.bf16.msra.mxu0 %v895
    %904 = vmatprep.subr.bf16.mxu0 0
    %905 = vmatpush1.bf16.msra.mxu0 %v896
    %906 = vmatprep.subr.bf16.mxu0 0
    %907 = vmatpush1.bf16.msra.mxu0 0
    %908 = vmatprep.subr.bf16.mxu0 0
    %909 = vmatpush1.bf16.msra.mxu0 0
    %910 = vmatprep.subr.bf16.mxu0 0
    %911 = vmatpush1.bf16.msra.mxu0 0
    %912 = vmatprep.subr.bf16.mxu0 0
    %913 = vmatpush1.bf16.msra.mxu0 0
    %914 = vmatprep.subr.bf16.mxu0 0
    %915 = vmatpush1.bf16.msra.mxu0 0
    %916 = vmatprep.subr.bf16.mxu0 0
    %917 = vmatpush1.bf16.msra.mxu0 0
    %918 = vmatprep.subr.bf16.mxu0 0
    %919 = vmatpush1.bf16.msra.mxu0 0
    %920 = vmatprep.subr.bf16.mxu0 0
    %921 = vmatpush1.bf16.msra.mxu0 0
    %922 = vmatprep.subr.bf16.mxu0 0
    %923 = vmatpush1.bf16.msra.mxu0 0
    %924 = vmatprep.subr.bf16.mxu0 0
    %925 = vmatpush1.bf16.msra.mxu0 0
    %926 = vmatprep.subr.bf16.mxu0 0
    %927 = vmatpush1.bf16.msra.mxu0 0
    %928 = vmatprep.subr.bf16.mxu0 0
    %929 = vmatpush1.bf16.msra.mxu0 0
    %930 = vmatprep.subr.bf16.mxu0 0
    %931 = vmatpush1.bf16.msra.mxu0 0
    %932 = vmatprep.subr.bf16.mxu0 0
    %933 = vmatpush1.bf16.msra.mxu0 0
    %934 = vmatprep.mubr.bf16.mxu0 0
    %935 = vmatmul.mubr.bf16.gmra.mrb[0].mxu0 %v900
    %v936 = vpop.f32.mrb[0].mxu0
    %v937 = vadd.f32 0.0, %v936
    %v938 = vpop.f32.mrb[0].mxu0
    %v939 = vpop.f32.mrb[0].mxu0
    %v940 = vpop.f32.mrb[0].mxu0
    %941 = vdwg.mxu0
    %v943 = vsel %vm452, %v894, 0
    %945 = vmatprep.subr.bf16.mxu0 0
    %946 = vmatpush1.bf16.msra.mxu0 %v897
    %947 = vmatprep.subr.bf16.mxu0 0
    %948 = vmatpush1.bf16.msra.mxu0 %v898
    %949 = vmatprep.subr.bf16.mxu0 0
    %950 = vmatpush1.bf16.msra.mxu0 0
    %951 = vmatprep.subr.bf16.mxu0 0
    %952 = vmatpush1.bf16.msra.mxu0 0
    %953 = vmatprep.subr.bf16.mxu0 0
    %954 = vmatpush1.bf16.msra.mxu0 0
    %955 = vmatprep.subr.bf16.mxu0 0
    %956 = vmatpush1.bf16.msra.mxu0 0
    %957 = vmatprep.subr.bf16.mxu0 0
    %958 = vmatpush1.bf16.msra.mxu0 0
    %959 = vmatprep.subr.bf16.mxu0 0
    %960 = vmatpush1.bf16.msra.mxu0 0
    %961 = vmatprep.subr.bf16.mxu0 0
    %962 = vmatpush1.bf16.msra.mxu0 0
    %963 = vmatprep.subr.bf16.mxu0 0
    %964 = vmatpush1.bf16.msra.mxu0 0
    %965 = vmatprep.subr.bf16.mxu0 0
    %966 = vmatpush1.bf16.msra.mxu0 0
    %967 = vmatprep.subr.bf16.mxu0 0
    %968 = vmatpush1.bf16.msra.mxu0 0
    %969 = vmatprep.subr.bf16.mxu0 0
    %970 = vmatpush1.bf16.msra.mxu0 0
    %971 = vmatprep.subr.bf16.mxu0 0
    %972 = vmatpush1.bf16.msra.mxu0 0
    %973 = vmatprep.subr.bf16.mxu0 0
    %974 = vmatpush1.bf16.msra.mxu0 0
    %975 = vmatprep.subr.bf16.mxu0 0
    %976 = vmatpush1.bf16.msra.mxu0 0
    %977 = vmatprep.mubr.bf16.mxu0 0
    %978 = vmatmul.mubr.bf16.gmra.mrb[0].mxu0 %v943
    %v979 = vpop.f32.mrb[0].mxu0
    %v980 = vadd.f32 0.0, %v979
    %v981 = vpop.f32.mrb[0].mxu0
    %v982 = vpop.f32.mrb[0].mxu0
    %v983 = vpop.f32.mrb[0].mxu0
    %984 = vdwg.mxu0
    %v985 = vld [vmem:[%s11] sm:$0xff]
    %v986 = vld [vmem:[%s11 + $0x8] sm:$0xff]
    %v987 = vld [vmem:[%s11 + $0x10] sm:$0xff]
    %v988 = vld [vmem:[%s11 + $0x18] sm:$0xff]
    %v989 = vpack.c.bf16 %v980, %v937
    %v990 = vpack.c.bf16 %v986, %v985
    %v991 = vpack.c.bf16 %v988, %v987
    %v992 = vld [vmem:[#allocation14] sm:$0x1]
    %v994 = vlaneseq
    %v995 = vshrl.u32 %v994, 7
    %v996 = vsub.s32 0, %v995
    %v997 = vrot.slane %v992, %v996
    %v1000 = vsel %vm452, %v989, 0
    %1002 = vmatprep.subr.bf16.mxu0 0
    %1003 = vmatpush1.bf16.msra.mxu0 %v990
    %1004 = vmatprep.subr.bf16.mxu0 0
    %1005 = vmatpush1.bf16.msra.mxu0 %v991
    %1006 = vmatprep.subr.bf16.mxu0 0
    %1007 = vmatpush1.bf16.msra.mxu0 0
    %1008 = vmatprep.subr.bf16.mxu0 0
    %1009 = vmatpush1.bf16.msra.mxu0 0
    %1010 = vmatprep.subr.bf16.mxu0 0
    %1011 = vmatpush1.bf16.msra.mxu0 0
    %1012 = vmatprep.subr.bf16.mxu0 0
    %1013 = vmatpush1.bf16.msra.mxu0 0
    %1014 = vmatprep.subr.bf16.mxu0 0
    %1015 = vmatpush1.bf16.msra.mxu0 0
    %1016 = vmatprep.subr.bf16.mxu0 0
    %1017 = vmatpush1.bf16.msra.mxu0 0
    %1018 = vmatprep.subr.bf16.mxu0 0
    %1019 = vmatpush1.bf16.msra.mxu0 0
    %1020 = vmatprep.subr.bf16.mxu0 0
    %1021 = vmatpush1.bf16.msra.mxu0 0
    %1022 = vmatprep.subr.bf16.mxu0 0
    %1023 = vmatpush1.bf16.msra.mxu0 0
    %1024 = vmatprep.subr.bf16.mxu0 0
    %1025 = vmatpush1.bf16.msra.mxu0 0
    %1026 = vmatprep.subr.bf16.mxu0 0
    %1027 = vmatpush1.bf16.msra.mxu0 0
    %1028 = vmatprep.subr.bf16.mxu0 0
    %1029 = vmatpush1.bf16.msra.mxu0 0
    %1030 = vmatprep.subr.bf16.mxu0 0
    %1031 = vmatpush1.bf16.msra.mxu0 0
    %1032 = vmatprep.subr.bf16.mxu0 0
    %1033 = vmatpush1.bf16.msra.mxu0 0
    %1034 = vmatprep.mubr.bf16.mxu0 0
    %1035 = vmatmul.mubr.bf16.gmra.mrb[0].mxu0 %v1000
    %v1036 = vpop.f32.mrb[0].mxu0
    %v1037 = vadd.f32 %v997, %v1036
    %v1038 = vpop.f32.mrb[0].mxu0
    %v1039 = vpop.f32.mrb[0].mxu0
    %v1040 = vadd.f32 %v997, %v1039
    %v1041 = vpop.f32.mrb[0].mxu0
    %1042 = vdwg.mxu0
    %v1043 = vadd.f32 %v494, %v1037
    %v1044 = vadd.f32 %v495, %v1040
    %v1045 = vld [vmem:[#allocation16] sm:$0x1]
    %v1046 = vld [vmem:[#allocation17] sm:$0x1]
    %v1047 = vsel %vm452, %v1043, 0.0
    %1048 = vadd.xlane.f32.xlu0 %v1047
    %v1049 = vpop.xlane.xlu0 %1048
    %v1050 = vsel %vm452, %v1044, 0.0
    %1051 = vadd.xlane.f32.xlu0 %v1050
    %v1052 = vpop.xlane.xlu0 %1051
    %v1053 = vmul.f32 %v1049, %v459
    %v1054 = vmul.f32 %v1052, %v459
    %v1055 = vsub.f32 %v1043, %v1053
    %v1056 = vsub.f32 %v1044, %v1054
    %v1057 = vmul.f32 %v1055, %v1055
    %v1058 = vmul.f32 %v1056, %v1056
    %v1059 = vsel %vm452, %v1057, 0.0
    %1060 = vadd.xlane.f32.xlu0 %v1059
    %v1061 = vpop.xlane.xlu0 %1060
    %v1062 = vsel %vm452, %v1058, 0.0
    %1063 = vadd.xlane.f32.xlu0 %v1062
    %v1064 = vpop.xlane.xlu0 %1063
    %v1065 = vmul.f32 %v1061, %v459
    %v1066 = vmul.f32 %v1064, %v459
    %v1067 = vadd.f32 %v1065, 1e-12
    %v1068 = vadd.f32 %v1066, 1e-12
    %v1069 = vrsqrt.pop %v1067
    %v1070 = vrsqrt.pop %v1068
    %v1071 = vmul.f32 %v1055, %v1069
    %v1072 = vmul.f32 %v1056, %v1070
    %v1074 = vlaneseq
    %v1075 = vshrl.u32 %v1074, 7
    %v1076 = vsub.s32 0, %v1075
    %v1077 = vrot.slane %v1045, %v1076
    %v1079 = vmul.f32 %v1071, %v1077
    %v1080 = vmul.f32 %v1072, %v1077
    %v1082 = vlaneseq
    %v1083 = vshrl.u32 %v1082, 7
    %v1084 = vsub.s32 0, %v1083
    %v1085 = vrot.slane %v1046, %v1084
    %v1087 = vadd.f32 %v1079, %v1085
    %v1088 = vadd.f32 %v1080, %v1085
    %v1089 = vld [vmem:[#allocation19] sm:$0xff]
    %v1090 = vld [vmem:[#allocation19 + $0x8] sm:$0xff]
    %v1091 = vld [vmem:[#allocation19 + $0x10] sm:$0xff]
    %v1092 = vld [vmem:[#allocation19 + $0x18] sm:$0xff]
    %v1093 = vpack.c.bf16 %v1088, %v1087
    %v1094 = vpack.c.bf16 %v1090, %v1089
    %v1095 = vpack.c.bf16 %v1092, %v1091
    %v1096 = vld [vmem:[#allocation20] sm:$0x1]
    %v1098 = vlaneseq
    %v1099 = vshrl.u32 %v1098, 7
    %v1100 = vsub.s32 0, %v1099
    %v1101 = vrot.slane %v1096, %v1100
    %v1104 = vsel %vm452, %v1093, 0
    %1106 = vmatprep.subr.bf16.mxu0 0
    %1107 = vmatpush1.bf16.msra.mxu0 %v1094
    %1108 = vmatprep.subr.bf16.mxu0 0
    %1109 = vmatpush1.bf16.msra.mxu0 %v1095
    %1110 = vmatprep.subr.bf16.mxu0 0
    %1111 = vmatpush1.bf16.msra.mxu0 0
    %1112 = vmatprep.subr.bf16.mxu0 0
    %1113 = vmatpush1.bf16.msra.mxu0 0
    %1114 = vmatprep.subr.bf16.mxu0 0
    %1115 = vmatpush1.bf16.msra.mxu0 0
    %1116 = vmatprep.subr.bf16.mxu0 0
    %1117 = vmatpush1.bf16.msra.mxu0 0
    %1118 = vmatprep.subr.bf16.mxu0 0
    %1119 = vmatpush1.bf16.msra.mxu0 0
    %1120 = vmatprep.subr.bf16.mxu0 0
    %1121 = vmatpush1.bf16.msra.mxu0 0
    %1122 = vmatprep.subr.bf16.mxu0 0
    %1123 = vmatpush1.bf16.msra.mxu0 0
    %1124 = vmatprep.subr.bf16.mxu0 0
    %1125 = vmatpush1.bf16.msra.mxu0 0
    %1126 = vmatprep.subr.bf16.mxu0 0
    %1127 = vmatpush1.bf16.msra.mxu0 0
    %1128 = vmatprep.subr.bf16.mxu0 0
    %1129 = vmatpush1.bf16.msra.mxu0 0
    %1130 = vmatprep.subr.bf16.mxu0 0
    %1131 = vmatpush1.bf16.msra.mxu0 0
    %1132 = vmatprep.subr.bf16.mxu0 0
    %1133 = vmatpush1.bf16.msra.mxu0 0
    %1134 = vmatprep.subr.bf16.mxu0 0
    %1135 = vmatpush1.bf16.msra.mxu0 0
    %1136 = vmatprep.subr.bf16.mxu0 0
    %1137 = vmatpush1.bf16.msra.mxu0 0
    %1138 = vmatprep.mubr.bf16.mxu0 0
    %1139 = vmatmul.mubr.bf16.gmra.mrb[0].mxu0 %v1104
    %v1140 = vpop.f32.mrb[0].mxu0
    %v1141 = vadd.f32 %v1101, %v1140
    %v1142 = vpop.f32.mrb[0].mxu0
    %v1143 = vpop.f32.mrb[0].mxu0
    %v1144 = vadd.f32 %v1101, %v1143
    %v1145 = vpop.f32.mrb[0].mxu0
    %1146 = vdwg.mxu0
    %v1147 = vmul.f32 %v1141, %v1141
    %v1148 = vmul.f32 %v1144, %v1144
    %v1149 = vmul.f32 %v1141, %v1147
    %v1150 = vmul.f32 %v1144, %v1148
    %v1151 = vmul.f32 %v1149, 0.044715
    %v1152 = vmul.f32 %v1150, 0.044715
    %v1153 = vadd.f32 %v1141, %v1151
    %v1154 = vadd.f32 %v1144, %v1152
    %v1155 = vmul.f32 %v1153, 0.7978846
    %v1156 = vmul.f32 %v1154, 0.7978846
    %v1157 = vtanh.pop %v1155
    %v1158 = vtanh.pop %v1156
    %v1159 = vadd.f32 %v1157, 1.0
    %v1160 = vadd.f32 %v1158, 1.0
    %v1161 = vmul.f32 %v1159, 0.5
    %v1162 = vmul.f32 %v1160, 0.5
    %v1163 = vmul.f32 %v1141, %v1161
    %v1164 = vmul.f32 %v1144, %v1162
    %v1165 = vld [vmem:[%s17] sm:$0xff]
    %v1166 = vld [vmem:[%s17 + $0x8] sm:$0xff]
    %v1167 = vld [vmem:[%s17 + $0x10] sm:$0xff]
    %v1168 = vld [vmem:[%s17 + $0x18] sm:$0xff]
    %v1169 = vld [vmem:[%s17 + $0x20] sm:$0xff]
    %v1170 = vld [vmem:[%s17 + $0x28] sm:$0xff]
    %v1171 = vld [vmem:[%s17 + $0x30] sm:$0xff]
    %v1172 = vld [vmem:[%s17 + $0x38] sm:$0xff]
    %v1173 = vpack.c.bf16 %v1164, %v1163
    %v1174 = vpack.c.bf16 %v1166, %v1165
    %v1175 = vpack.c.bf16 %v1168, %v1167
    %v1176 = vpack.c.bf16 %v1170, %v1169
    %v1177 = vpack.c.bf16 %v1172, %v1171
    %v1178 = vld [vmem:[#allocation22] sm:$0x1]
    %v1180 = vlaneseq
    %v1181 = vshrl.u32 %v1180, 7
    %v1182 = vsub.s32 0, %v1181
    %v1183 = vrot.slane %v1178, %v1182
    %vm1185 = vcmask 523264
    %v1187 = vsel %vm1185, %v1173, 0
    %1189 = vmatprep.subr.bf16.mxu0 0
    %1190 = vmatpush1.bf16.msra.mxu0 %v1174
    %1191 = vmatprep.subr.bf16.mxu0 0
    %1192 = vmatpush1.bf16.msra.mxu0 %v1175
    %1193 = vmatprep.subr.bf16.mxu0 0
    %1194 = vmatpush1.bf16.msra.mxu0 %v1176
    %1195 = vmatprep.subr.bf16.mxu0 0
    %1196 = vmatpush1.bf16.msra.mxu0 %v1177
    %1197 = vmatprep.subr.bf16.mxu0 0
    %1198 = vmatpush1.bf16.msra.mxu0 0
    %1199 = vmatprep.subr.bf16.mxu0 0
    %1200 = vmatpush1.bf16.msra.mxu0 0
    %1201 = vmatprep.subr.bf16.mxu0 0
    %1202 = vmatpush1.bf16.msra.mxu0 0
    %1203 = vmatprep.subr.bf16.mxu0 0
    %1204 = vmatpush1.bf16.msra.mxu0 0
    %1205 = vmatprep.subr.bf16.mxu0 0
    %1206 = vmatpush1.bf16.msra.mxu0 0
    %1207 = vmatprep.subr.bf16.mxu0 0
    %1208 = vmatpush1.bf16.msra.mxu0 0
    %1209 = vmatprep.subr.bf16.mxu0 0
    %1210 = vmatpush1.bf16.msra.mxu0 0
    %1211 = vmatprep.subr.bf16.mxu0 0
    %1212 = vmatpush1.bf16.msra.mxu0 0
    %1213 = vmatprep.subr.bf16.mxu0 0
    %1214 = vmatpush1.bf16.msra.mxu0 0
    %1215 = vmatprep.subr.bf16.mxu0 0
    %1216 = vmatpush1.bf16.msra.mxu0 0
    %1217 = vmatprep.subr.bf16.mxu0 0
    %1218 = vmatpush1.bf16.msra.mxu0 0
    %1219 = vmatprep.subr.bf16.mxu0 0
    %1220 = vmatpush1.bf16.msra.mxu0 0
    %1221 = vmatprep.mubr.bf16.mxu0 0
    %1222 = vmatmul.mubr.bf16.gmra.mrb[0].mxu0 %v1187
    %v1223 = vpop.f32.mrb[0].mxu0
    %v1224 = vadd.f32 %v1183, %v1223
    %v1225 = vpop.f32.mrb[0].mxu0
    %v1226 = vpop.f32.mrb[0].mxu0
    %v1227 = vadd.f32 %v1183, %v1226
    %v1228 = vpop.f32.mrb[0].mxu0
    %1229 = vdwg.mxu0
    %v1230 = vadd.f32 %v1087, %v1224
    %v1231 = vadd.f32 %v1088, %v1227
    %v1232 = vld [vmem:[#allocation23] sm:$0x1]
    %v1233 = vld [vmem:[#allocation25] sm:$0x1]
    %v1234 = vsel %vm452, %v1230, 0.0
    %1235 = vadd.xlane.f32.xlu0 %v1234
    %v1236 = vpop.xlane.xlu0 %1235
    %v1237 = vsel %vm452, %v1231, 0.0
    %1238 = vadd.xlane.f32.xlu0 %v1237
    %v1239 = vpop.xlane.xlu0 %1238
    %v1240 = vmul.f32 %v1236, %v459
    %v1241 = vmul.f32 %v1239, %v459
    %v1242 = vsub.f32 %v1230, %v1240
    %v1243 = vsub.f32 %v1231, %v1241
    %v1244 = vmul.f32 %v1242, %v1242
    %v1245 = vmul.f32 %v1243, %v1243
    %v1246 = vsel %vm452, %v1244, 0.0
    %1247 = vadd.xlane.f32.xlu0 %v1246
    %v1248 = vpop.xlane.xlu0 %1247
    %v1249 = vsel %vm452, %v1245, 0.0
    %1250 = vadd.xlane.f32.xlu0 %v1249
    %v1251 = vpop.xlane.xlu0 %1250
    %v1252 = vmul.f32 %v1248, %v459
    %v1253 = vmul.f32 %v1251, %v459
    %v1254 = vadd.f32 %v1252, 1e-12
    %v1255 = vadd.f32 %v1253, 1e-12
    %v1256 = vrsqrt.pop %v1254
    %v1257 = vrsqrt.pop %v1255
    %v1258 = vmul.f32 %v1242, %v1256
    %v1259 = vmul.f32 %v1243, %v1257
    %v1261 = vlaneseq
    %v1262 = vshrl.u32 %v1261, 7
    %v1263 = vsub.s32 0, %v1262
    %v1264 = vrot.slane %v1232, %v1263
    %v1266 = vmul.f32 %v1258, %v1264
    %v1267 = vmul.f32 %v1259, %v1264
    %v1269 = vlaneseq
    %v1270 = vshrl.u32 %v1269, 7
    %v1271 = vsub.s32 0, %v1270
    %v1272 = vrot.slane %v1233, %v1271
    %v1274 = vadd.f32 %v1266, %v1272
    %v1275 = vadd.f32 %v1267, %v1272
    %s1276 = scalar_lea.vmem %s5, 32
    %v1277 = vld [vmem:[%s1276] sm:$0xff]
    %v1278 = vld [vmem:[%s1276 + $0x8] sm:$0xff]
    %v1279 = vld [vmem:[%s1276 + $0x10] sm:$0xff]
    %v1280 = vld [vmem:[%s1276 + $0x18] sm:$0xff]
    %v1281 = vpack.c.bf16 %v1275, %v1274
    %v1282 = vpack.c.bf16 %v1278, %v1277
    %v1283 = vpack.c.bf16 %v1280, %v1279
    %s1284 = scalar_lea.vmem [#allocation10], 1
    %v1285 = vld [vmem:[%s1284] sm:$0x1]
    %v1287 = vlaneseq
    %v1288 = vshrl.u32 %v1287, 7
    %v1289 = vsub.s32 0, %v1288
    %v1290 = vrot.slane %v1285, %v1289
    %v1293 = vsel %vm452, %v1281, 0
    %1295 = vmatprep.subr.bf16.mxu0 0
    %1296 = vmatpush1.bf16.msra.mxu0 %v1282
    %1297 = vmatprep.subr.bf16.mxu0 0
    %1298 = vmatpush1.bf16.msra.mxu0 %v1283
    %1299 = vmatprep.subr.bf16.mxu0 0
    %1300 = vmatpush1.bf16.msra.mxu0 0
    %1301 = vmatprep.subr.bf16.mxu0 0
    %1302 = vmatpush1.bf16.msra.mxu0 0
    %1303 = vmatprep.subr.bf16.mxu0 0
    %1304 = vmatpush1.bf16.msra.mxu0 0
    %1305 = vmatprep.subr.bf16.mxu0 0
    %1306 = vmatpush1.bf16.msra.mxu0 0
    %1307 = vmatprep.subr.bf16.mxu0 0
    %1308 = vmatpush1.bf16.msra.mxu0 0
    %1309 = vmatprep.subr.bf16.mxu0 0
    %1310 = vmatpush1.bf16.msra.mxu0 0
    %1311 = vmatprep.subr.bf16.mxu0 0
    %1312 = vmatpush1.bf16.msra.mxu0 0
    %1313 = vmatprep.subr.bf16.mxu0 0
    %1314 = vmatpush1.bf16.msra.mxu0 0
    %1315 = vmatprep.subr.bf16.mxu0 0
    %1316 = vmatpush1.bf16.msra.mxu0 0
    %1317 = vmatprep.subr.bf16.mxu0 0
    %1318 = vmatpush1.bf16.msra.mxu0 0
    %1319 = vmatprep.subr.bf16.mxu0 0
    %1320 = vmatpush1.bf16.msra.mxu0 0
    %1321 = vmatprep.subr.bf16.mxu0 0
    %1322 = vmatpush1.bf16.msra.mxu0 0
    %1323 = vmatprep.subr.bf16.mxu0 0
    %1324 = vmatpush1.bf16.msra.mxu0 0
    %1325 = vmatprep.subr.bf16.mxu0 0
    %1326 = vmatpush1.bf16.msra.mxu0 0
    %1327 = vmatprep.mubr.bf16.mxu0 0
    %1328 = vmatmul.mubr.bf16.gmra.mrb[0].mxu0 %v1293
    %v1329 = vpop.f32.mrb[0].mxu0
    %v1330 = vadd.f32 %v1290, %v1329
    %v1331 = vpop.f32.mrb[0].mxu0
    %v1332 = vpop.f32.mrb[0].mxu0
    %v1333 = vadd.f32 %v1290, %v1332
    %v1334 = vpop.f32.mrb[0].mxu0
    %1335 = vdwg.mxu0
    %s1336 = scalar_lea.vmem %s7, 32
    %v1337 = vld [vmem:[%s1336] sm:$0xff]
    %v1338 = vld [vmem:[%s1336 + $0x8] sm:$0xff]
    %v1339 = vld [vmem:[%s1336 + $0x10] sm:$0xff]
    %v1340 = vld [vmem:[%s1336 + $0x18] sm:$0xff]
    %v1341 = vpack.c.bf16 %v1338, %v1337
    %v1342 = vpack.c.bf16 %v1340, %v1339
    %s1343 = scalar_lea.vmem [#allocation11], 1
    %v1344 = vld [vmem:[%s1343] sm:$0x1]
    %v1346 = vlaneseq
    %v1347 = vshrl.u32 %v1346, 7
    %v1348 = vsub.s32 0, %v1347
    %v1349 = vrot.slane %v1344, %v1348
    %1351 = vmatprep.subr.bf16.mxu0 0
    %1352 = vmatpush1.bf16.msra.mxu0 %v1341
    %1353 = vmatprep.subr.bf16.mxu0 0
    %1354 = vmatpush1.bf16.msra.mxu0 %v1342
    %1355 = vmatprep.subr.bf16.mxu0 0
    %1356 = vmatpush1.bf16.msra.mxu0 0
    %1357 = vmatprep.subr.bf16.mxu0 0
    %1358 = vmatpush1.bf16.msra.mxu0 0
    %1359 = vmatprep.subr.bf16.mxu0 0
    %1360 = vmatpush1.bf16.msra.mxu0 0
    %1361 = vmatprep.subr.bf16.mxu0 0
    %1362 = vmatpush1.bf16.msra.mxu0 0
    %1363 = vmatprep.subr.bf16.mxu0 0
    %1364 = vmatpush1.bf16.msra.mxu0 0
    %1365 = vmatprep.subr.bf16.mxu0 0
    %1366 = vmatpush1.bf16.msra.mxu0 0
    %1367 = vmatprep.subr.bf16.mxu0 0
    %1368 = vmatpush1.bf16.msra.mxu0 0
    %1369 = vmatprep.subr.bf16.mxu0 0
    %1370 = vmatpush1.bf16.msra.mxu0 0
    %1371 = vmatprep.subr.bf16.mxu0 0
    %1372 = vmatpush1.bf16.msra.mxu0 0
    %1373 = vmatprep.subr.bf16.mxu0 0
    %1374 = vmatpush1.bf16.msra.mxu0 0
    %1375 = vmatprep.subr.bf16.mxu0 0
    %1376 = vmatpush1.bf16.msra.mxu0 0
    %1377 = vmatprep.subr.bf16.mxu0 0
    %1378 = vmatpush1.bf16.msra.mxu0 0
    %1379 = vmatprep.subr.bf16.mxu0 0
    %1380 = vmatpush1.bf16.msra.mxu0 0
    %1381 = vmatprep.subr.bf16.mxu0 0
    %1382 = vmatpush1.bf16.msra.mxu0 0
    %1383 = vmatprep.mubr.bf16.mxu0 0
    %1384 = vmatmul.mubr.bf16.gmra.mrb[0].mxu0 %v1293
    %v1385 = vpop.f32.mrb[0].mxu0
    %v1386 = vadd.f32 %v1349, %v1385
    %v1387 = vpop.f32.mrb[0].mxu0
    %v1388 = vpop.f32.mrb[0].mxu0
    %v1389 = vadd.f32 %v1349, %v1388
    %v1390 = vpop.f32.mrb[0].mxu0
    %1391 = vdwg.mxu0
    %s1392 = scalar_lea.vmem %s9, 32
    %v1393 = vld [vmem:[%s1392] sm:$0xff]
    %v1394 = vld [vmem:[%s1392 + $0x8] sm:$0xff]
    %v1395 = vld [vmem:[%s1392 + $0x10] sm:$0xff]
    %v1396 = vld [vmem:[%s1392 + $0x18] sm:$0xff]
    %v1397 = vpack.c.bf16 %v1394, %v1393
    %v1398 = vpack.c.bf16 %v1396, %v1395
    %s1399 = scalar_lea.vmem [#allocation13], 1
    %v1400 = vld [vmem:[%s1399] sm:$0x1]
    %v1402 = vlaneseq
    %v1403 = vshrl.u32 %v1402, 7
    %v1404 = vsub.s32 0, %v1403
    %v1405 = vrot.slane %v1400, %v1404
    %1407 = vmatprep.subr.bf16.mxu0 0
    %1408 = vmatpush1.bf16.msra.mxu0 %v1397
    %1409 = vmatprep.subr.bf16.mxu0 0
    %1410 = vmatpush1.bf16.msra.mxu0 %v1398
    %1411 = vmatprep.subr.bf16.mxu0 0
    %1412 = vmatpush1.bf16.msra.mxu0 0
    %1413 = vmatprep.subr.bf16.mxu0 0
    %1414 = vmatpush1.bf16.msra.mxu0 0
    %1415 = vmatprep.subr.bf16.mxu0 0
    %1416 = vmatpush1.bf16.msra.mxu0 0
    %1417 = vmatprep.subr.bf16.mxu0 0
    %1418 = vmatpush1.bf16.msra.mxu0 0
    %1419 = vmatprep.subr.bf16.mxu0 0
    %1420 = vmatpush1.bf16.msra.mxu0 0
    %1421 = vmatprep.subr.bf16.mxu0 0
    %1422 = vmatpush1.bf16.msra.mxu0 0
    %1423 = vmatprep.subr.bf16.mxu0 0
    %1424 = vmatpush1.bf16.msra.mxu0 0
    %1425 = vmatprep.subr.bf16.mxu0 0
    %1426 = vmatpush1.bf16.msra.mxu0 0
    %1427 = vmatprep.subr.bf16.mxu0 0
    %1428 = vmatpush1.bf16.msra.mxu0 0
    %1429 = vmatprep.subr.bf16.mxu0 0
    %1430 = vmatpush1.bf16.msra.mxu0 0
    %1431 = vmatprep.subr.bf16.mxu0 0
    %1432 = vmatpush1.bf16.msra.mxu0 0
    %1433 = vmatprep.subr.bf16.mxu0 0
    %1434 = vmatpush1.bf16.msra.mxu0 0
    %1435 = vmatprep.subr.bf16.mxu0 0
    %1436 = vmatpush1.bf16.msra.mxu0 0
    %1437 = vmatprep.subr.bf16.mxu0 0
    %1438 = vmatpush1.bf16.msra.mxu0 0
    %1439 = vmatprep.mubr.bf16.mxu0 0
    %1440 = vmatmul.mubr.bf16.gmra.mrb[0].mxu0 %v1293
    %v1441 = vpop.f32.mrb[0].mxu0
    %v1442 = vadd.f32 %v1405, %v1441
    %v1443 = vpop.f32.mrb[0].mxu0
    %v1444 = vpop.f32.mrb[0].mxu0
    %v1445 = vadd.f32 %v1405, %v1444
    %v1446 = vpop.f32.mrb[0].mxu0
    %1447 = vdwg.mxu0
    %v1448 = vmul.f32 %v1386, %v496
    %v1449 = vmul.f32 %v1386, %v497
    %v1450 = vmul.f32 %v1386, %v498
    %v1451 = vmul.f32 %v1386, %v499
    %v1452 = vmul.f32 %v1389, %v496
    %v1453 = vmul.f32 %v1389, %v497
    %v1454 = vmul.f32 %v1389, %v498
    %v1455 = vmul.f32 %v1389, %v499
    %v1456 = vmul.f32 %v1442, %v496
    %v1457 = vmul.f32 %v1442, %v497
    %v1458 = vmul.f32 %v1442, %v498
    %v1459 = vmul.f32 %v1442, %v499
    %v1460 = vmul.f32 %v1445, %v496
    %v1461 = vmul.f32 %v1445, %v497
    %v1462 = vmul.f32 %v1445, %v498
    %v1463 = vmul.f32 %v1445, %v499
    %v1464 = vpack.c.bf16 %v1330, %v1330
    %v1465 = vpack.c.bf16 %v1333, %v1333
    %v1466 = vpack.c.bf16 %v1449, %v1448
    %v1467 = vpack.c.bf16 %v1451, %v1450
    %v1468 = vpack.c.bf16 %v1453, %v1452
    %v1469 = vpack.c.bf16 %v1455, %v1454
    %v1471 = vsel %vm452, %v1464, 0
    %v1474 = vsel %vm452, %v1466, 0
    %v1477 = vsel %vm452, %v1467, 0
    %1479 = vmatprep.subr.bf16.mxu0 0
    %1480 = vmatpush1.bf16.xpose.msra.mxu0 %v1474
    %1481 = vmatprep.subr.bf16.mxu0 0
    %1482 = vmatpush1.bf16.xpose.msra.mxu0 %v1477
    %1483 = vmatprep.subr.bf16.mxu0 0
    %1484 = vmatpush1.bf16.xpose.msra.mxu0 0
    %1485 = vmatprep.subr.bf16.mxu0 0
    %1486 = vmatpush1.bf16.xpose.msra.mxu0 0
    %1487 = vmatprep.subr.bf16.mxu0 0
    %1488 = vmatpush1.bf16.xpose.msra.mxu0 0
    %1489 = vmatprep.subr.bf16.mxu0 0
    %1490 = vmatpush1.bf16.xpose.msra.mxu0 0
    %1491 = vmatprep.subr.bf16.mxu0 0
    %1492 = vmatpush1.bf16.xpose.msra.mxu0 0
    %1493 = vmatprep.subr.bf16.mxu0 0
    %1494 = vmatpush1.bf16.xpose.msra.mxu0 0
    %1495 = vmatprep.subr.bf16.mxu0 0
    %1496 = vmatpush1.bf16.xpose.msra.mxu0 0
    %1497 = vmatprep.subr.bf16.mxu0 0
    %1498 = vmatpush1.bf16.xpose.msra.mxu0 0
    %1499 = vmatprep.subr.bf16.mxu0 0
    %1500 = vmatpush1.bf16.xpose.msra.mxu0 0
    %1501 = vmatprep.subr.bf16.mxu0 0
    %1502 = vmatpush1.bf16.xpose.msra.mxu0 0
    %1503 = vmatprep.subr.bf16.mxu0 0
    %1504 = vmatpush1.bf16.xpose.msra.mxu0 0
    %1505 = vmatprep.subr.bf16.mxu0 0
    %1506 = vmatpush1.bf16.xpose.msra.mxu0 0
    %1507 = vmatprep.subr.bf16.mxu0 0
    %1508 = vmatpush1.bf16.xpose.msra.mxu0 0
    %1509 = vmatprep.subr.bf16.mxu0 0
    %1510 = vmatpush1.bf16.xpose.msra.mxu0 0
    %1511 = vmatprep.mubr.bf16.mxu0 0
    %1512 = vmatmul.mubr.bf16.gmra.mrb[0].mxu0 %v1471
    %v1513 = vpop.f32.mrb[0].mxu0
    %v1514 = vadd.f32 0.0, %v1513
    %v1515 = vpop.f32.mrb[0].mxu0
    %v1516 = vpop.f32.mrb[0].mxu0
    %v1517 = vpop.f32.mrb[0].mxu0
    %1518 = vdwg.mxu0
    %v1520 = vsel %vm452, %v1465, 0
    %v1523 = vsel %vm452, %v1468, 0
    %v1526 = vsel %vm452, %v1469, 0
    %1528 = vmatprep.subr.bf16.mxu0 0
    %1529 = vmatpush1.bf16.xpose.msra.mxu0 %v1523
    %1530 = vmatprep.subr.bf16.mxu0 0
    %1531 = vmatpush1.bf16.xpose.msra.mxu0 %v1526
    %1532 = vmatprep.subr.bf16.mxu0 0
    %1533 = vmatpush1.bf16.xpose.msra.mxu0 0
    %1534 = vmatprep.subr.bf16.mxu0 0
    %1535 = vmatpush1.bf16.xpose.msra.mxu0 0
    %1536 = vmatprep.subr.bf16.mxu0 0
    %1537 = vmatpush1.bf16.xpose.msra.mxu0 0
    %1538 = vmatprep.subr.bf16.mxu0 0
    %1539 = vmatpush1.bf16.xpose.msra.mxu0 0
    %1540 = vmatprep.subr.bf16.mxu0 0
    %1541 = vmatpush1.bf16.xpose.msra.mxu0 0
    %1542 = vmatprep.subr.bf16.mxu0 0
    %1543 = vmatpush1.bf16.xpose.msra.mxu0 0
    %1544 = vmatprep.subr.bf16.mxu0 0
    %1545 = vmatpush1.bf16.xpose.msra.mxu0 0
    %1546 = vmatprep.subr.bf16.mxu0 0
    %1547 = vmatpush1.bf16.xpose.msra.mxu0 0
    %1548 = vmatprep.subr.bf16.mxu0 0
    %1549 = vmatpush1.bf16.xpose.msra.mxu0 0
    %1550 = vmatprep.subr.bf16.mxu0 0
    %1551 = vmatpush1.bf16.xpose.msra.mxu0 0
    %1552 = vmatprep.subr.bf16.mxu0 0
    %1553 = vmatpush1.bf16.xpose.msra.mxu0 0
    %1554 = vmatprep.subr.bf16.mxu0 0
    %1555 = vmatpush1.bf16.xpose.msra.mxu0 0
    %1556 = vmatprep.subr.bf16.mxu0 0
    %1557 = vmatpush1.bf16.xpose.msra.mxu0 0
    %1558 = vmatprep.subr.bf16.mxu0 0
    %1559 = vmatpush1.bf16.xpose.msra.mxu0 0
    %1560 = vmatprep.mubr.bf16.mxu0 0
    %1561 = vmatmul.mubr.bf16.gmra.mrb[0].mxu0 %v1520
    %v1562 = vpop.f32.mrb[0].mxu0
    %v1563 = vadd.f32 0.0, %v1562
    %v1564 = vpop.f32.mrb[0].mxu0
    %v1565 = vpop.f32.mrb[0].mxu0
    %v1566 = vpop.f32.mrb[0].mxu0
    %1567 = vdwg.mxu0
    %v1568 = vmul.f32 %v1514, 0.35355338
    %v1569 = vmul.f32 %v1563, 0.35355338
    %v1570 = vadd.f32 %v1568, %v795
    %v1571 = vadd.f32 %v1569, %v799
    %v1572 = vmul.f32 %v1570, 1.442695
    %v1573 = vpow.pop %v1572
    %v1574 = vmul.f32 %v1571, 1.442695
    %v1575 = vpow.pop %v1574
    %v1577 = vsel %vm452, %v1573, 0
    %v1580 = vsel %vm452, %v1575, 0
    %1582 = vmatprep.subr.mxu0 0.0
    %1583 = vmatpush1.msra.mxu0 %v500
    %1584 = vmatprep.subr.mxu0 0.0
    %1585 = vmatpush1.msra.mxu0 %v501
    %1586 = vmatprep.subr.mxu0 0.0
    %1587 = vmatpush1.msra.mxu0 %v502
    %1588 = vmatprep.subr.mxu0 0.0
    %1589 = vmatpush1.msra.mxu0 %v503
    %1590 = vmatprep.subr.mxu0 0.0
    %1591 = vmatpush1.msra.mxu0 0.0
    %1592 = vmatprep.subr.mxu0 0.0
    %1593 = vmatpush1.msra.mxu0 0.0
    %1594 = vmatprep.subr.mxu0 0.0
    %1595 = vmatpush1.msra.mxu0 0.0
    %1596 = vmatprep.subr.mxu0 0.0
    %1597 = vmatpush1.msra.mxu0 0.0
    %1598 = vmatprep.subr.mxu0 0.0
    %1599 = vmatpush1.msra.mxu0 0.0
    %1600 = vmatprep.subr.mxu0 0.0
    %1601 = vmatpush1.msra.mxu0 0.0
    %1602 = vmatprep.subr.mxu0 0.0
    %1603 = vmatpush1.msra.mxu0 0.0
    %1604 = vmatprep.subr.mxu0 0.0
    %1605 = vmatpush1.msra.mxu0 0.0
    %1606 = vmatprep.subr.mxu0 0.0
    %1607 = vmatpush1.msra.mxu0 0.0
    %1608 = vmatprep.subr.mxu0 0.0
    %1609 = vmatpush1.msra.mxu0 0.0
    %1610 = vmatprep.subr.mxu0 0.0
    %1611 = vmatpush1.msra.mxu0 0.0
    %1612 = vmatprep.subr.mxu0 0.0
    %1613 = vmatpush1.msra.mxu0 0.0
    %1614 = vmatprep.subr.mxu0 0.0
    %1615 = vmatpush1.msra.mxu0 0.0
    %1616 = vmatprep.subr.mxu0 0.0
    %1617 = vmatpush1.msra.mxu0 0.0
    %1618 = vmatprep.subr.mxu0 0.0
    %1619 = vmatpush1.msra.mxu0 0.0
    %1620 = vmatprep.subr.mxu0 0.0
    %1621 = vmatpush1.msra.mxu0 0.0
    %1622 = vmatprep.subr.mxu0 0.0
    %1623 = vmatpush1.msra.mxu0 0.0
    %1624 = vmatprep.subr.mxu0 0.0
    %1625 = vmatpush1.msra.mxu0 0.0
    %1626 = vmatprep.subr.mxu0 0.0
    %1627 = vmatpush1.msra.mxu0 0.0
    %1628 = vmatprep.subr.mxu0 0.0
    %1629 = vmatpush1.msra.mxu0 0.0
    %1630 = vmatprep.subr.mxu0 0.0
    %1631 = vmatpush1.msra.mxu0 0.0
    %1632 = vmatprep.subr.mxu0 0.0
    %1633 = vmatpush1.msra.mxu0 0.0
    %1634 = vmatprep.subr.mxu0 0.0
    %1635 = vmatpush1.msra.mxu0 0.0
    %1636 = vmatprep.subr.mxu0 0.0
    %1637 = vmatpush1.msra.mxu0 0.0
    %1638 = vmatprep.subr.mxu0 0.0
    %1639 = vmatpush1.msra.mxu0 0.0
    %1640 = vmatprep.subr.mxu0 0.0
    %1641 = vmatpush1.msra.mxu0 0.0
    %1642 = vmatprep.subr.mxu0 0.0
    %1643 = vmatpush1.msra.mxu0 0.0
    %1644 = vmatprep.subr.mxu0 0.0
    %1645 = vmatpush1.msra.mxu0 0.0
    %1646 = vmatprep.mubr.f32.mxu0 0.0
    %1647 = vmatmul.mubr.f32.gmra.mrb[0].mxu0 %v1577
    %v1648 = vpop.f32.mrb[0].mxu0
    %v1649 = vadd.f32 0.0, %v1648
    %v1650 = vpop.f32.mrb[0].mxu0
    %1651 = vmatprep.mubr.f32.mxu0 0.0
    %1652 = vmatmul.mubr.f32.gmra.mrb[0].mxu0 %v1580
    %v1653 = vpop.f32.mrb[0].mxu0
    %v1654 = vadd.f32 0.0, %v1653
    %v1655 = vpop.f32.mrb[0].mxu0
    %1656 = vdwg.mxu0
    %v1657 = vrcp.pop %v1649
    %v1658 = vrcp.pop %v1654
    %v1659 = vmul.f32 %v1573, %v1657
    %v1660 = vmul.f32 %v1575, %v1658
    %v1661 = vpack.c.bf16 %v1659, %v1659
    %v1662 = vpack.c.bf16 %v1660, %v1660
    %v1663 = vpack.c.bf16 %v1457, %v1456
    %v1664 = vpack.c.bf16 %v1459, %v1458
    %v1665 = vpack.c.bf16 %v1461, %v1460
    %v1666 = vpack.c.bf16 %v1463, %v1462
    %v1668 = vsel %vm452, %v1661, 0
    %1670 = vmatprep.subr.bf16.mxu0 0
    %1671 = vmatpush1.bf16.msra.mxu0 %v1663
    %1672 = vmatprep.subr.bf16.mxu0 0
    %1673 = vmatpush1.bf16.msra.mxu0 %v1664
    %1674 = vmatprep.subr.bf16.mxu0 0
    %1675 = vmatpush1.bf16.msra.mxu0 0
    %1676 = vmatprep.subr.bf16.mxu0 0
    %1677 = vmatpush1.bf16.msra.mxu0 0
    %1678 = vmatprep.subr.bf16.mxu0 0
    %1679 = vmatpush1.bf16.msra.mxu0 0
    %1680 = vmatprep.subr.bf16.mxu0 0
    %1681 = vmatpush1.bf16.msra.mxu0 0
    %1682 = vmatprep.subr.bf16.mxu0 0
    %1683 = vmatpush1.bf16.msra.mxu0 0
    %1684 = vmatprep.subr.bf16.mxu0 0
    %1685 = vmatpush1.bf16.msra.mxu0 0
    %1686 = vmatprep.subr.bf16.mxu0 0
    %1687 = vmatpush1.bf16.msra.mxu0 0
    %1688 = vmatprep.subr.bf16.mxu0 0
    %1689 = vmatpush1.bf16.msra.mxu0 0
    %1690 = vmatprep.subr.bf16.mxu0 0
    %1691 = vmatpush1.bf16.msra.mxu0 0
    %1692 = vmatprep.subr.bf16.mxu0 0
    %1693 = vmatpush1.bf16.msra.mxu0 0
    %1694 = vmatprep.subr.bf16.mxu0 0
    %1695 = vmatpush1.bf16.msra.mxu0 0
    %1696 = vmatprep.subr.bf16.mxu0 0
    %1697 = vmatpush1.bf16.msra.mxu0 0
    %1698 = vmatprep.subr.bf16.mxu0 0
    %1699 = vmatpush1.bf16.msra.mxu0 0
    %1700 = vmatprep.subr.bf16.mxu0 0
    %1701 = vmatpush1.bf16.msra.mxu0 0
    %1702 = vmatprep.mubr.bf16.mxu0 0
    %1703 = vmatmul.mubr.bf16.gmra.mrb[0].mxu0 %v1668
    %v1704 = vpop.f32.mrb[0].mxu0
    %v1705 = vadd.f32 0.0, %v1704
    %v1706 = vpop.f32.mrb[0].mxu0
    %v1707 = vpop.f32.mrb[0].mxu0
    %v1708 = vpop.f32.mrb[0].mxu0
    %1709 = vdwg.mxu0
    %v1711 = vsel %vm452, %v1662, 0
    %1713 = vmatprep.subr.bf16.mxu0 0
    %1714 = vmatpush1.bf16.msra.mxu0 %v1665
    %1715 = vmatprep.subr.bf16.mxu0 0
    %1716 = vmatpush1.bf16.msra.mxu0 %v1666
    %1717 = vmatprep.subr.bf16.mxu0 0
    %1718 = vmatpush1.bf16.msra.mxu0 0
    %1719 = vmatprep.subr.bf16.mxu0 0
    %1720 = vmatpush1.bf16.msra.mxu0 0
    %1721 = vmatprep.subr.bf16.mxu0 0
    %1722 = vmatpush1.bf16.msra.mxu0 0
    %1723 = vmatprep.subr.bf16.mxu0 0
    %1724 = vmatpush1.bf16.msra.mxu0 0
    %1725 = vmatprep.subr.bf16.mxu0 0
    %1726 = vmatpush1.bf16.msra.mxu0 0
    %1727 = vmatprep.subr.bf16.mxu0 0
    %1728 = vmatpush1.bf16.msra.mxu0 0
    %1729 = vmatprep.subr.bf16.mxu0 0
    %1730 = vmatpush1.bf16.msra.mxu0 0
    %1731 = vmatprep.subr.bf16.mxu0 0
    %1732 = vmatpush1.bf16.msra.mxu0 0
    %1733 = vmatprep.subr.bf16.mxu0 0
    %1734 = vmatpush1.bf16.msra.mxu0 0
    %1735 = vmatprep.subr.bf16.mxu0 0
    %1736 = vmatpush1.bf16.msra.mxu0 0
    %1737 = vmatprep.subr.bf16.mxu0 0
    %1738 = vmatpush1.bf16.msra.mxu0 0
    %1739 = vmatprep.subr.bf16.mxu0 0
    %1740 = vmatpush1.bf16.msra.mxu0 0
    %1741 = vmatprep.subr.bf16.mxu0 0
    %1742 = vmatpush1.bf16.msra.mxu0 0
    %1743 = vmatprep.subr.bf16.mxu0 0
    %1744 = vmatpush1.bf16.msra.mxu0 0
    %1745 = vmatprep.mubr.bf16.mxu0 0
    %1746 = vmatmul.mubr.bf16.gmra.mrb[0].mxu0 %v1711
    %v1747 = vpop.f32.mrb[0].mxu0
    %v1748 = vadd.f32 0.0, %v1747
    %v1749 = vpop.f32.mrb[0].mxu0
    %v1750 = vpop.f32.mrb[0].mxu0
    %v1751 = vpop.f32.mrb[0].mxu0
    %1752 = vdwg.mxu0
    %s1753 = scalar_lea.vmem %s11, 32
    %v1754 = vld [vmem:[%s1753] sm:$0xff]
    %v1755 = vld [vmem:[%s1753 + $0x8] sm:$0xff]
    %v1756 = vld [vmem:[%s1753 + $0x10] sm:$0xff]
    %v1757 = vld [vmem:[%s1753 + $0x18] sm:$0xff]
    %v1758 = vpack.c.bf16 %v1748, %v1705
    %v1759 = vpack.c.bf16 %v1755, %v1754
    %v1760 = vpack.c.bf16 %v1757, %v1756
    %s1761 = scalar_lea.vmem [#allocation14], 1
    %v1762 = vld [vmem:[%s1761] sm:$0x1]
    %v1764 = vlaneseq
    %v1765 = vshrl.u32 %v1764, 7
    %v1766 = vsub.s32 0, %v1765
    %v1767 = vrot.slane %v1762, %v1766
    %v1770 = vsel %vm452, %v1758, 0
    %1772 = vmatprep.subr.bf16.mxu0 0
    %1773 = vmatpush1.bf16.msra.mxu0 %v1759
    %1774 = vmatprep.subr.bf16.mxu0 0
    %1775 = vmatpush1.bf16.msra.mxu0 %v1760
    %1776 = vmatprep.subr.bf16.mxu0 0
    %1777 = vmatpush1.bf16.msra.mxu0 0
    %1778 = vmatprep.subr.bf16.mxu0 0
    %1779 = vmatpush1.bf16.msra.mxu0 0
    %1780 = vmatprep.subr.bf16.mxu0 0
    %1781 = vmatpush1.bf16.msra.mxu0 0
    %1782 = vmatprep.subr.bf16.mxu0 0
    %1783 = vmatpush1.bf16.msra.mxu0 0
    %1784 = vmatprep.subr.bf16.mxu0 0
    %1785 = vmatpush1.bf16.msra.mxu0 0
    %1786 = vmatprep.subr.bf16.mxu0 0
    %1787 = vmatpush1.bf16.msra.mxu0 0
    %1788 = vmatprep.subr.bf16.mxu0 0
    %1789 = vmatpush1.bf16.msra.mxu0 0
    %1790 = vmatprep.subr.bf16.mxu0 0
    %1791 = vmatpush1.bf16.msra.mxu0 0
    %1792 = vmatprep.subr.bf16.mxu0 0
    %1793 = vmatpush1.bf16.msra.mxu0 0
    %1794 = vmatprep.subr.bf16.mxu0 0
    %1795 = vmatpush1.bf16.msra.mxu0 0
    %1796 = vmatprep.subr.bf16.mxu0 0
    %1797 = vmatpush1.bf16.msra.mxu0 0
    %1798 = vmatprep.subr.bf16.mxu0 0
    %1799 = vmatpush1.bf16.msra.mxu0 0
    %1800 = vmatprep.subr.bf16.mxu0 0
    %1801 = vmatpush1.bf16.msra.mxu0 0
    %1802 = vmatprep.subr.bf16.mxu0 0
    %1803 = vmatpush1.bf16.msra.mxu0 0
    %1804 = vmatprep.mubr.bf16.mxu0 0
    %1805 = vmatmul.mubr.bf16.gmra.mrb[0].mxu0 %v1770
    %v1806 = vpop.f32.mrb[0].mxu0
    %v1807 = vadd.f32 %v1767, %v1806
    %v1808 = vpop.f32.mrb[0].mxu0
    %v1809 = vpop.f32.mrb[0].mxu0
    %v1810 = vadd.f32 %v1767, %v1809
    %v1811 = vpop.f32.mrb[0].mxu0
    %1812 = vdwg.mxu0
    %v1813 = vadd.f32 %v1274, %v1807
    %v1814 = vadd.f32 %v1275, %v1810
    %s1815 = scalar_lea.vmem [#allocation16], 1
    %v1816 = vld [vmem:[%s1815] sm:$0x1]
    %s1817 = scalar_lea.vmem [#allocation17], 1
    %v1818 = vld [vmem:[%s1817] sm:$0x1]
    %v1819 = vsel %vm452, %v1813, 0.0
    %1820 = vadd.xlane.f32.xlu0 %v1819
    %v1821 = vpop.xlane.xlu0 %1820
    %v1822 = vsel %vm452, %v1814, 0.0
    %1823 = vadd.xlane.f32.xlu0 %v1822
    %v1824 = vpop.xlane.xlu0 %1823
    %v1825 = vmul.f32 %v1821, %v459
    %v1826 = vmul.f32 %v1824, %v459
    %v1827 = vsub.f32 %v1813, %v1825
    %v1828 = vsub.f32 %v1814, %v1826
    %v1829 = vmul.f32 %v1827, %v1827
    %v1830 = vmul.f32 %v1828, %v1828
    %v1831 = vsel %vm452, %v1829, 0.0
    %1832 = vadd.xlane.f32.xlu0 %v1831
    %v1833 = vpop.xlane.xlu0 %1832
    %v1834 = vsel %vm452, %v1830, 0.0
    %1835 = vadd.xlane.f32.xlu0 %v1834
    %v1836 = vpop.xlane.xlu0 %1835
    %v1837 = vmul.f32 %v1833, %v459
    %v1838 = vmul.f32 %v1836, %v459
    %v1839 = vadd.f32 %v1837, 1e-12
    %v1840 = vadd.f32 %v1838, 1e-12
    %v1841 = vrsqrt.pop %v1839
    %v1842 = vrsqrt.pop %v1840
    %v1843 = vmul.f32 %v1827, %v1841
    %v1844 = vmul.f32 %v1828, %v1842
    %v1846 = vlaneseq
    %v1847 = vshrl.u32 %v1846, 7
    %v1848 = vsub.s32 0, %v1847
    %v1849 = vrot.slane %v1816, %v1848
    %v1851 = vmul.f32 %v1843, %v1849
    %v1852 = vmul.f32 %v1844, %v1849
    %v1854 = vlaneseq
    %v1855 = vshrl.u32 %v1854, 7
    %v1856 = vsub.s32 0, %v1855
    %v1857 = vrot.slane %v1818, %v1856
    %v1859 = vadd.f32 %v1851, %v1857
    %v1860 = vadd.f32 %v1852, %v1857
    %s1861 = scalar_lea.vmem [#allocation19], 32
    %v1862 = vld [vmem:[%s1861] sm:$0xff]
    %v1863 = vld [vmem:[%s1861 + $0x8] sm:$0xff]
    %v1864 = vld [vmem:[%s1861 + $0x10] sm:$0xff]
    %v1865 = vld [vmem:[%s1861 + $0x18] sm:$0xff]
    %v1866 = vpack.c.bf16 %v1860, %v1859
    %v1867 = vpack.c.bf16 %v1863, %v1862
    %v1868 = vpack.c.bf16 %v1865, %v1864
    %s1869 = scalar_lea.vmem [#allocation20], 1
    %v1870 = vld [vmem:[%s1869] sm:$0x1]
    %v1872 = vlaneseq
    %v1873 = vshrl.u32 %v1872, 7
    %v1874 = vsub.s32 0, %v1873
    %v1875 = vrot.slane %v1870, %v1874
    %v1878 = vsel %vm452, %v1866, 0
    %1880 = vmatprep.subr.bf16.mxu0 0
    %1881 = vmatpush1.bf16.msra.mxu0 %v1867
    %1882 = vmatprep.subr.bf16.mxu0 0
    %1883 = vmatpush1.bf16.msra.mxu0 %v1868
    %1884 = vmatprep.subr.bf16.mxu0 0
    %1885 = vmatpush1.bf16.msra.mxu0 0
    %1886 = vmatprep.subr.bf16.mxu0 0
    %1887 = vmatpush1.bf16.msra.mxu0 0
    %1888 = vmatprep.subr.bf16.mxu0 0
    %1889 = vmatpush1.bf16.msra.mxu0 0
    %1890 = vmatprep.subr.bf16.mxu0 0
    %1891 = vmatpush1.bf16.msra.mxu0 0
    %1892 = vmatprep.subr.bf16.mxu0 0
    %1893 = vmatpush1.bf16.msra.mxu0 0
    %1894 = vmatprep.subr.bf16.mxu0 0
    %1895 = vmatpush1.bf16.msra.mxu0 0
    %1896 = vmatprep.subr.bf16.mxu0 0
    %1897 = vmatpush1.bf16.msra.mxu0 0
    %1898 = vmatprep.subr.bf16.mxu0 0
    %1899 = vmatpush1.bf16.msra.mxu0 0
    %1900 = vmatprep.subr.bf16.mxu0 0
    %1901 = vmatpush1.bf16.msra.mxu0 0
    %1902 = vmatprep.subr.bf16.mxu0 0
    %1903 = vmatpush1.bf16.msra.mxu0 0
    %1904 = vmatprep.subr.bf16.mxu0 0
    %1905 = vmatpush1.bf16.msra.mxu0 0
    %1906 = vmatprep.subr.bf16.mxu0 0
    %1907 = vmatpush1.bf16.msra.mxu0 0
    %1908 = vmatprep.subr.bf16.mxu0 0
    %1909 = vmatpush1.bf16.msra.mxu0 0
    %1910 = vmatprep.subr.bf16.mxu0 0
    %1911 = vmatpush1.bf16.msra.mxu0 0
    %1912 = vmatprep.mubr.bf16.mxu0 0
    %1913 = vmatmul.mubr.bf16.gmra.mrb[0].mxu0 %v1878
    %v1914 = vpop.f32.mrb[0].mxu0
    %v1915 = vadd.f32 %v1875, %v1914
    %v1916 = vpop.f32.mrb[0].mxu0
    %v1917 = vpop.f32.mrb[0].mxu0
    %v1918 = vadd.f32 %v1875, %v1917
    %v1919 = vpop.f32.mrb[0].mxu0
    %1920 = vdwg.mxu0
    %v1921 = vmul.f32 %v1915, %v1915
    %v1922 = vmul.f32 %v1918, %v1918
    %v1923 = vmul.f32 %v1915, %v1921
    %v1924 = vmul.f32 %v1918, %v1922
    %v1925 = vmul.f32 %v1923, 0.044715
    %v1926 = vmul.f32 %v1924, 0.044715
    %v1927 = vadd.f32 %v1915, %v1925
    %v1928 = vadd.f32 %v1918, %v1926
    %v1929 = vmul.f32 %v1927, 0.7978846
    %v1930 = vmul.f32 %v1928, 0.7978846
    %v1931 = vtanh.pop %v1929
    %v1932 = vtanh.pop %v1930
    %v1933 = vadd.f32 %v1931, 1.0
    %v1934 = vadd.f32 %v1932, 1.0
    %v1935 = vmul.f32 %v1933, 0.5
    %v1936 = vmul.f32 %v1934, 0.5
    %v1937 = vmul.f32 %v1915, %v1935
    %v1938 = vmul.f32 %v1918, %v1936
    %s1939 = scalar_lea.vmem %s17, 64
    %v1940 = vld [vmem:[%s1939] sm:$0xff]
    %v1941 = vld [vmem:[%s1939 + $0x8] sm:$0xff]
    %v1942 = vld [vmem:[%s1939 + $0x10] sm:$0xff]
    %v1943 = vld [vmem:[%s1939 + $0x18] sm:$0xff]
    %v1944 = vld [vmem:[%s1939 + $0x20] sm:$0xff]
    %v1945 = vld [vmem:[%s1939 + $0x28] sm:$0xff]
    %v1946 = vld [vmem:[%s1939 + $0x30] sm:$0xff]
    %v1947 = vld [vmem:[%s1939 + $0x38] sm:$0xff]
    %v1948 = vpack.c.bf16 %v1938, %v1937
    %v1949 = vpack.c.bf16 %v1941, %v1940
    %v1950 = vpack.c.bf16 %v1943, %v1942
    %v1951 = vpack.c.bf16 %v1945, %v1944
    %v1952 = vpack.c.bf16 %v1947, %v1946
    %s1953 = scalar_lea.vmem [#allocation22], 1
    %v1954 = vld [vmem:[%s1953] sm:$0x1]
    %v1956 = vlaneseq
    %v1957 = vshrl.u32 %v1956, 7
    %v1958 = vsub.s32 0, %v1957
    %v1959 = vrot.slane %v1954, %v1958
    %v1962 = vsel %vm1185, %v1948, 0
    %1964 = vmatprep.subr.bf16.mxu0 0
    %1965 = vmatpush1.bf16.msra.mxu0 %v1949
    %1966 = vmatprep.subr.bf16.mxu0 0
    %1967 = vmatpush1.bf16.msra.mxu0 %v1950
    %1968 = vmatprep.subr.bf16.mxu0 0
    %1969 = vmatpush1.bf16.msra.mxu0 %v1951
    %1970 = vmatprep.subr.bf16.mxu0 0
    %1971 = vmatpush1.bf16.msra.mxu0 %v1952
    %1972 = vmatprep.subr.bf16.mxu0 0
    %1973 = vmatpush1.bf16.msra.mxu0 0
    %1974 = vmatprep.subr.bf16.mxu0 0
    %1975 = vmatpush1.bf16.msra.mxu0 0
    %1976 = vmatprep.subr.bf16.mxu0 0
    %1977 = vmatpush1.bf16.msra.mxu0 0
    %1978 = vmatprep.subr.bf16.mxu0 0
    %1979 = vmatpush1.bf16.msra.mxu0 0
    %1980 = vmatprep.subr.bf16.mxu0 0
    %1981 = vmatpush1.bf16.msra.mxu0 0
    %1982 = vmatprep.subr.bf16.mxu0 0
    %1983 = vmatpush1.bf16.msra.mxu0 0
    %1984 = vmatprep.subr.bf16.mxu0 0
    %1985 = vmatpush1.bf16.msra.mxu0 0
    %1986 = vmatprep.subr.bf16.mxu0 0
    %1987 = vmatpush1.bf16.msra.mxu0 0
    %1988 = vmatprep.subr.bf16.mxu0 0
    %1989 = vmatpush1.bf16.msra.mxu0 0
    %1990 = vmatprep.subr.bf16.mxu0 0
    %1991 = vmatpush1.bf16.msra.mxu0 0
    %1992 = vmatprep.subr.bf16.mxu0 0
    %1993 = vmatpush1.bf16.msra.mxu0 0
    %1994 = vmatprep.subr.bf16.mxu0 0
    %1995 = vmatpush1.bf16.msra.mxu0 0
    %1996 = vmatprep.mubr.bf16.mxu0 0
    %1997 = vmatmul.mubr.bf16.gmra.mrb[0].mxu0 %v1962
    %v1998 = vpop.f32.mrb[0].mxu0
    %v1999 = vadd.f32 %v1959, %v1998
    %v2000 = vpop.f32.mrb[0].mxu0
    %v2001 = vpop.f32.mrb[0].mxu0
    %v2002 = vadd.f32 %v1959, %v2001
    %v2003 = vpop.f32.mrb[0].mxu0
    %2004 = vdwg.mxu0
    %v2005 = vadd.f32 %v1859, %v1999
    %v2006 = vadd.f32 %v1860, %v2002
    %s2007 = scalar_lea.vmem [#allocation23], 1
    %v2008 = vld [vmem:[%s2007] sm:$0x1]
    %s2009 = scalar_lea.vmem [#allocation25], 1
    %v2010 = vld [vmem:[%s2009] sm:$0x1]
    %v2011 = vsel %vm452, %v2005, 0.0
    %2012 = vadd.xlane.f32.xlu0 %v2011
    %v2013 = vpop.xlane.xlu0 %2012
    %v2014 = vsel %vm452, %v2006, 0.0
    %2015 = vadd.xlane.f32.xlu0 %v2014
    %v2016 = vpop.xlane.xlu0 %2015
    %v2017 = vmul.f32 %v2013, %v459
    %v2018 = vmul.f32 %v2016, %v459
    %v2019 = vsub.f32 %v2005, %v2017
    %v2020 = vsub.f32 %v2006, %v2018
    %v2021 = vmul.f32 %v2019, %v2019
    %v2022 = vmul.f32 %v2020, %v2020
    %v2023 = vsel %vm452, %v2021, 0.0
    %2024 = vadd.xlane.f32.xlu0 %v2023
    %v2025 = vpop.xlane.xlu0 %2024
    %v2026 = vsel %vm452, %v2022, 0.0
    %2027 = vadd.xlane.f32.xlu0 %v2026
    %v2028 = vpop.xlane.xlu0 %2027
    %v2029 = vmul.f32 %v2025, %v459
    %v2030 = vmul.f32 %v2028, %v459
    %v2031 = vadd.f32 %v2029, 1e-12
    %v2032 = vadd.f32 %v2030, 1e-12
    %v2033 = vrsqrt.pop %v2031
    %v2034 = vrsqrt.pop %v2032
    %v2035 = vmul.f32 %v2019, %v2033
    %v2036 = vmul.f32 %v2020, %v2034
    %v2038 = vlaneseq
    %v2039 = vshrl.u32 %v2038, 7
    %v2040 = vsub.s32 0, %v2039
    %v2041 = vrot.slane %v2008, %v2040
    %v2043 = vmul.f32 %v2035, %v2041
    %v2044 = vmul.f32 %v2036, %v2041
    %v2046 = vlaneseq
    %v2047 = vshrl.u32 %v2046, 7
    %v2048 = vsub.s32 0, %v2047
    %v2049 = vrot.slane %v2010, %v2048
    %v2051 = vadd.f32 %v2043, %v2049
    %v2052 = vadd.f32 %v2044, %v2049
    %v2053 = vld [vmem:[%s25] sm:$0x3]
    %v2055 = vsel %vm307, %v2053, 0
    %2057 = vmatprep.subr.mxu0 0.0
    %2058 = vmatpush1.msra.mxu0 %v2051
    %2059 = vmatprep.subr.mxu0 0.0
    %2060 = vmatpush1.msra.mxu0 %v2052
    %2061 = vmatprep.subr.mxu0 0.0
    %2062 = vmatpush1.msra.mxu0 0.0
    %2063 = vmatprep.subr.mxu0 0.0
    %2064 = vmatpush1.msra.mxu0 0.0
    %2065 = vmatprep.subr.mxu0 0.0
    %2066 = vmatpush1.msra.mxu0 0.0
    %2067 = vmatprep.subr.mxu0 0.0
    %2068 = vmatpush1.msra.mxu0 0.0
    %2069 = vmatprep.subr.mxu0 0.0
    %2070 = vmatpush1.msra.mxu0 0.0
    %2071 = vmatprep.subr.mxu0 0.0
    %2072 = vmatpush1.msra.mxu0 0.0
    %2073 = vmatprep.subr.mxu0 0.0
    %2074 = vmatpush1.msra.mxu0 0.0
    %2075 = vmatprep.subr.mxu0 0.0
    %2076 = vmatpush1.msra.mxu0 0.0
    %2077 = vmatprep.subr.mxu0 0.0
    %2078 = vmatpush1.msra.mxu0 0.0
    %2079 = vmatprep.subr.mxu0 0.0
    %2080 = vmatpush1.msra.mxu0 0.0
    %2081 = vmatprep.subr.mxu0 0.0
    %2082 = vmatpush1.msra.mxu0 0.0
    %2083 = vmatprep.subr.mxu0 0.0
    %2084 = vmatpush1.msra.mxu0 0.0
    %2085 = vmatprep.subr.mxu0 0.0
    %2086 = vmatpush1.msra.mxu0 0.0
    %2087 = vmatprep.subr.mxu0 0.0
    %2088 = vmatpush1.msra.mxu0 0.0
    %2089 = vmatprep.subr.mxu0 0.0
    %2090 = vmatpush1.msra.mxu0 0.0
    %2091 = vmatprep.subr.mxu0 0.0
    %2092 = vmatpush1.msra.mxu0 0.0
    %2093 = vmatprep.subr.mxu0 0.0
    %2094 = vmatpush1.msra.mxu0 0.0
    %2095 = vmatprep.subr.mxu0 0.0
    %2096 = vmatpush1.msra.mxu0 0.0
    %2097 = vmatprep.subr.mxu0 0.0
    %2098 = vmatpush1.msra.mxu0 0.0
    %2099 = vmatprep.subr.mxu0 0.0
    %2100 = vmatpush1.msra.mxu0 0.0
    %2101 = vmatprep.subr.mxu0 0.0
    %2102 = vmatpush1.msra.mxu0 0.0
    %2103 = vmatprep.subr.mxu0 0.0
    %2104 = vmatpush1.msra.mxu0 0.0
    %2105 = vmatprep.subr.mxu0 0.0
    %2106 = vmatpush1.msra.mxu0 0.0
    %2107 = vmatprep.subr.mxu0 0.0
    %2108 = vmatpush1.msra.mxu0 0.0
    %2109 = vmatprep.subr.mxu0 0.0
    %2110 = vmatpush1.msra.mxu0 0.0
    %2111 = vmatprep.subr.mxu0 0.0
    %2112 = vmatpush1.msra.mxu0 0.0
    %2113 = vmatprep.subr.mxu0 0.0
    %2114 = vmatpush1.msra.mxu0 0.0
    %2115 = vmatprep.subr.mxu0 0.0
    %2116 = vmatpush1.msra.mxu0 0.0
    %2117 = vmatprep.subr.mxu0 0.0
    %2118 = vmatpush1.msra.mxu0 0.0
    %2119 = vmatprep.subr.mxu0 0.0
    %2120 = vmatpush1.msra.mxu0 0.0
    %2121 = vmatprep.mubr.f32.mxu0 0.0
    %2122 = vmatmul.mubr.f32.gmra.mrb[0].mxu0 %v2055
    %v2123 = vpop.f32.mrb[0].mxu0
    %v2124 = vadd.f32 0.0, %v2123
    %v2125 = vpop.f32.mrb[0].mxu0
    %2126 = vdwg.mxu0
    %v2127 = vld [vmem:[%s21] sm:$0xff]
    %v2128 = vld [vmem:[%s21 + $0x8] sm:$0xff]
    %v2129 = vld [vmem:[%s21 + $0x10] sm:$0xff]
    %v2130 = vld [vmem:[%s21 + $0x18] sm:$0xff]
    %v2131 = vpack.c.bf16 %v2124, %v2124
    %v2132 = vpack.c.bf16 %v2128, %v2127
    %v2133 = vpack.c.bf16 %v2130, %v2129
    %v2134 = vld [vmem:[#allocation26] sm:$0x1]
    %v2136 = vlaneseq
    %v2137 = vshrl.u32 %v2136, 7
    %v2138 = vsub.s32 0, %v2137
    %v2139 = vrot.slane %v2134, %v2138
    %v2142 = vsel %vm452, %v2131, 0
    %2144 = vmatprep.subr.bf16.mxu0 0
    %2145 = vmatpush1.bf16.msra.mxu0 %v2132
    %2146 = vmatprep.subr.bf16.mxu0 0
    %2147 = vmatpush1.bf16.msra.mxu0 %v2133
    %2148 = vmatprep.subr.bf16.mxu0 0
    %2149 = vmatpush1.bf16.msra.mxu0 0
    %2150 = vmatprep.subr.bf16.mxu0 0
    %2151 = vmatpush1.bf16.msra.mxu0 0
    %2152 = vmatprep.subr.bf16.mxu0 0
    %2153 = vmatpush1.bf16.msra.mxu0 0
    %2154 = vmatprep.subr.bf16.mxu0 0
    %2155 = vmatpush1.bf16.msra.mxu0 0
    %2156 = vmatprep.subr.bf16.mxu0 0
    %2157 = vmatpush1.bf16.msra.mxu0 0
    %2158 = vmatprep.subr.bf16.mxu0 0
    %2159 = vmatpush1.bf16.msra.mxu0 0
    %2160 = vmatprep.subr.bf16.mxu0 0
    %2161 = vmatpush1.bf16.msra.mxu0 0
    %2162 = vmatprep.subr.bf16.mxu0 0
    %2163 = vmatpush1.bf16.msra.mxu0 0
    %2164 = vmatprep.subr.bf16.mxu0 0
    %2165 = vmatpush1.bf16.msra.mxu0 0
    %2166 = vmatprep.subr.bf16.mxu0 0
    %2167 = vmatpush1.bf16.msra.mxu0 0
    %2168 = vmatprep.subr.bf16.mxu0 0
    %2169 = vmatpush1.bf16.msra.mxu0 0
    %2170 = vmatprep.subr.bf16.mxu0 0
    %2171 = vmatpush1.bf16.msra.mxu0 0
    %2172 = vmatprep.subr.bf16.mxu0 0
    %2173 = vmatpush1.bf16.msra.mxu0 0
    %2174 = vmatprep.subr.bf16.mxu0 0
    %2175 = vmatpush1.bf16.msra.mxu0 0
    %2176 = vmatprep.mubr.bf16.mxu0 0
    %2177 = vmatmul.mubr.bf16.gmra.mrb[0].mxu0 %v2142
    %v2178 = vpop.f32.mrb[0].mxu0
    %v2179 = vadd.f32 %v2139, %v2178
    %v2180 = vpop.f32.mrb[0].mxu0
    %v2181 = vpop.f32.mrb[0].mxu0
    %v2182 = vpop.f32.mrb[0].mxu0
    %2183 = vdwg.mxu0
    %v2184 = vxor.u32 %v2179, 2147483648
    %v2185 = vmul.f32 %v2184, 1.442695
    %v2186 = vpow.pop %v2185
    %v2187 = vadd.f32 %v2186, 1.0
    %v2188 = vrcp.pop %v2187
    %v2189 = vmul.f32 1.0, %v2188
    %vm2190 = vcmask 17408
    %2191 = vst.msk [vmem:[#allocation28] sm:$0x3] %vm2190, %v2189
    // Predicated region
    $region170: #{custom_model2_forward.1} parent=1 // pred_check
      _
    $region171: #{custom_model2_forward.1} parent=1 // pred_check_branch
      %2193 = sbr.rel (0) target = $region173
    $region172: #{custom_model2_forward.1} parent=1 // pred_region
      %s2195 = ssub.s32 32, 32
      %2196 = vsyncadd [#allocation4], %s2195
      %s2198 = sshll.u32 [#allocation28], 4
      %s2199 = int_to_ptr.vmem [resolvable:$true] %s2198
      %2201 = dma.vmem_to_hbm [thread:$0]  %s2199, 32, %s26, [#allocation4]
    $region173: #{custom_model2_forward.1} parent=1 // pred_fallthru
      _
    // Predicated region
    $region174: #{custom_model2_forward.1} parent=1 // pred_check
      _
    $region175: #{custom_model2_forward.1} parent=1 // pred_check_branch
      %2203 = sbr.rel (0) target = $region177
    $region176: #{custom_model2_forward.1} parent=1 // pred_region
      %2204 = dma.done [#allocation4], 32
    $region177: #{custom_model2_forward.1} parent=1 // pred_fallthru
      _
    %2205 = vsyncpa [#allocation3], 1
    %2206 = vsyncpa [#allocation6], 1
    %2207 = vsyncpa [#allocation9], 1
    %2208 = vsyncpa [#allocation12], 1
    %2209 = vsyncpa [#allocation15], 1
    %2210 = vsyncpa [#allocation18], 1
    %2211 = vsyncpa [#allocation21], 1
    %2212 = vsyncpa [#allocation24], 1
    %2213 = vsyncpa [#allocation27], 1
    %2214 = vsyncpa [#allocation4], 1

</llo_original>
